<compile_context>
chip_gen: v6e
topology: v6e:2x2x1
jax: 0.10.0
libtpu: 0.0.40
codegen_flags: <defaults>
</compile_context>

<pallas_src>
import functools

import jax
import jax.numpy as jnp
from jax.experimental import pallas as pl
from jax.experimental.pallas import tpu as pltpu

NUM_CLASSES = 20      # get_classes_list() -> PASCAL VOC, 20 classes
FEAT = 512            # ResNet18 fc.in_features
LANE = 128


def single_network_kernel(x_ref, w_ref, b_ref, wl_ref, bl_ref, o_ref, feat_ref,
                          *, inv_hw):
    """Grid = (batch blocks ["parallel"], HW tiles ["arbitrary" reduction]).

    x_ref:    (tb, C, thw)    NCHW slice; HW tile on the lane axis (bf16)
    w_ref:    (FEAT, C)       1x1-conv stand-in weight, pre-transposed (bf16)
    b_ref:    (FEAT, 1)       conv bias as a column (f32)
    wl_ref:   (FEAT, NCP)     head weight, lane-padded to NCP = 128 (f32)
    bl_ref:   (1, NCP)        head bias, lane-padded (f32)
    o_ref:    (tb, NCP)       sigmoid(logits); resident across the HW axis
    feat_ref: (tb, FEAT, 1)   f32 scratch: pooled-sum accumulator per image
    """
    j = pl.program_id(1)
    last_j = pl.num_programs(1) - 1
    tb = x_ref.shape[0]

    @pl.when(j == 0)
    def _init():
        feat_ref[...] = jnp.zeros_like(feat_ref)

    w = w_ref[...]            # (FEAT, C)  bf16
    bias = b_ref[...]         # (FEAT, 1)  f32

    def conv_pool(im, carry):
        x_im = x_ref[im]                                               # (C, thw) bf16
        # 1x1-conv stand-in: bf16 MXU matmul with f32 accumulation.
        h = jnp.dot(w, x_im, preferred_element_type=jnp.float32)       # (FEAT, thw) f32
        h = jnp.maximum(h + bias, 0.0)                                 # bias + ReLU (VPU)
        # Partial global-average-pool: XLU lane reduce, accumulated in f32 scratch.
        feat_ref[im] += jnp.sum(h, axis=-1, keepdims=True)             # (FEAT, 1)
        return carry

    jax.lax.fori_loop(0, tb, conv_pool, 0)

    @pl.when(j == last_j)
    def _head():
        wl = wl_ref[...]                                               # (FEAT, NCP)
        bl = bl_ref[...]                                               # (1, NCP)

        def head_one(im, carry):
            feat_col = feat_ref[im] * inv_hw                           # (FEAT, 1) mean pool
            # Tiny head: lane-broadcast multiply + sublane reduce (keeps MXU free).
            logits = jnp.sum(feat_col * wl, axis=0, keepdims=True) + bl   # (1, NCP)
            o_ref[pl.ds(im, 1), :] = pl.reciprocal(
                1.0 + jnp.exp(-logits), approx=True)                   # sigmoid (EUP)
            return carry

        jax.lax.fori_loop(0, tb, head_one, 0)


def _pick_tb(batch):
    """Prefer 8-aligned batch tiles with >=2 grid steps (pipelining / megacore)."""
    if batch % 8 == 0 and batch // 8 >= 2:
        return 8
    return batch


def _pick_thw(hw, cap=2048):
    """Largest multiple-of-128 divisor of HW up to `cap` (h slab <= ~4 MiB)."""
    best = None
    t = 128
    while t <= min(hw, cap):
        if hw % t == 0:
            best = t
        t += 128
    return best if best is not None else hw


def single_network_forward(inputs, params, *, tb=None, thw=None):
    """inputs: NCHW float32 array. Returns (B, NUM_CLASSES) float32."""
    B, C, H, W = inputs.shape
    HW = H * W
    w, b, wl, bl = params                      # (C,FEAT), (FEAT,), (FEAT,NC), (NC,)
    nc = wl.shape[1]
    ncp = ((nc + LANE - 1) // LANE) * LANE     # pad head to a lane-dense 128

    tb = _pick_tb(B) if tb is None else tb
    assert B % tb == 0, "batch must be divisible by the per-step batch tile"
    assert tb == B or tb % 8 == 0, "output block sublane dim must be full or %8==0"
    thw = _pick_thw(HW) if thw is None else thw
    assert HW % thw == 0, "HW must be divisible by the HW tile"

    x = inputs.reshape(B, C, HW).astype(jnp.bfloat16)   # layout glue only, no transpose
    w_t = jnp.transpose(w).astype(jnp.bfloat16)         # (FEAT, C) — tiny, one-time
    b_col = b.reshape(FEAT, 1).astype(jnp.float32)
    wl_p = jnp.zeros((FEAT, ncp), jnp.float32).at[:, :nc].set(wl)
    bl_p = jnp.zeros((1, ncp), jnp.float32).at[:, :nc].set(bl.reshape(1, nc))

    kernel = functools.partial(single_network_kernel, inv_hw=1.0 / HW)

    out = pl.pallas_call(
        kernel,
        out_shape=jax.ShapeDtypeStruct((B, ncp), jnp.float32),
        grid=(B // tb, HW // thw),
        in_specs=[
            pl.BlockSpec((tb, C, thw), lambda i, j: (i, 0, j)),
            pl.BlockSpec((FEAT, C), lambda i, j: (0, 0)),
            pl.BlockSpec((FEAT, 1), lambda i, j: (0, 0)),
            pl.BlockSpec((FEAT, ncp), lambda i, j: (0, 0)),
            pl.BlockSpec((1, ncp), lambda i, j: (0, 0)),
        ],
        out_specs=pl.BlockSpec((tb, ncp), lambda i, j: (i, 0)),   # resident across HW axis
        scratch_shapes=[pltpu.VMEM((tb, FEAT, 1), jnp.float32)],
        compiler_params=pltpu.CompilerParams(
            dimension_semantics=("parallel", "arbitrary"),
            vmem_limit_bytes=32 * 1024 * 1024),
    )(x, w_t, b_col, wl_p, bl_p)

    return out[:, :nc]                            # slice the lane padding back off


def reference_forward(inputs, params):
    """Pure-JAX f32 reference of the same semantics (sanity check)."""
    B, C, H, W = inputs.shape
    w, b, wl, bl = params
    x = inputs.reshape(B, C, H * W)                              # (B, C, HW)
    h = jnp.einsum('bcx,cf->bxf', x, w) + b                      # (B, HW, FEAT)
    feat = jnp.mean(jnp.maximum(h, 0.0), axis=1)                 # (B, FEAT)
    logits = feat @ wl + bl
    return 1.0 / (1.0 + jnp.exp(-logits))


def make_params(key, c_in):
    k = jax.random.split(key, 4)
    w = jax.random.normal(k[0], (c_in, FEAT), jnp.float32) * 0.05
    b = jax.random.normal(k[1], (FEAT,), jnp.float32) * 0.01
    wl = jax.random.normal(k[2], (FEAT, NUM_CLASSES), jnp.float32) * 0.02
    bl = jax.random.normal(k[3], (NUM_CLASSES,), jnp.float32) * 0.01
    return (w, b, wl, bl)


if __name__ == "__main__":
    key = jax.random.PRNGKey(0)
    k_in, k_par = jax.random.split(key)

    B, C, H, W = 2, 4, 16, 16      # 4 channels: the weight_init='kaiminghe' branch
    inputs = jax.random.normal(k_in, (B, C, H, W), jnp.float32)
    params = make_params(k_par, C)

    # thw=128 -> 2 HW grid steps, exercising the pooled-sum accumulation path.
    out = single_network_forward(inputs, params, thw=128)
    out = jax.block_until_ready(out)

    ref = reference_forward(inputs, params)
    assert out.shape == (B, NUM_CLASSES)
    err = float(jnp.max(jnp.abs(out - ref)))
    # Tolerance relaxed vs. f32 reference: bf16 operands + approx reciprocal.
    assert err < 5e-3, err

    print("KERNEL_OK")
</pallas_src>

<mosaic_0001>
module attributes {stable_mosaic.version = 11 : i64} {
  func.func @single_network_kernel(%arg0: i32, %arg1: i32, %arg2: memref<2x4x128xbf16, #tpu.memory_space<vmem>>, %arg3: memref<512x4xbf16, #tpu.memory_space<vmem>>, %arg4: memref<512x1xf32, #tpu.memory_space<vmem>>, %arg5: memref<512x128xf32, #tpu.memory_space<vmem>>, %arg6: memref<1x128xf32, #tpu.memory_space<vmem>>, %arg7: memref<2x128xf32, #tpu.memory_space<vmem>>, %arg8: memref<2x512x1xf32, #tpu.memory_space<vmem>>) attributes {dimension_semantics = [#tpu.dimension_semantics<parallel>, #tpu.dimension_semantics<arbitrary>], iteration_bounds = array<i64: 1, 2>, scalar_prefetch = 0 : i64, scratch_operands = 1 : i64, tpu.core_type = #tpu.core_type<tc>, window_params = [{transform_indices = @transform_0, window_bounds = array<i64: 2, 4, 128>}, {pipeline_mode = #tpu.pipeline_mode<synchronous>, transform_indices = @transform_1, window_bounds = array<i64: 512, 4>}, {pipeline_mode = #tpu.pipeline_mode<synchronous>, transform_indices = @transform_2, window_bounds = array<i64: 512, 1>}, {pipeline_mode = #tpu.pipeline_mode<synchronous>, transform_indices = @transform_3, window_bounds = array<i64: 512, 128>}, {pipeline_mode = #tpu.pipeline_mode<synchronous>, transform_indices = @transform_4, window_bounds = array<i64: 1, 128>}, {transform_indices = @transform_5, window_bounds = array<i64: 2, 128>}]} {
    %c0_i32 = arith.constant 0 : i32
    %0 = arith.cmpi eq, %arg1, %c0_i32 : i32
    %1 = arith.extui %0 : i1 to i32
    %c0_i32_0 = arith.constant 0 : i32
    %2 = arith.cmpi ne, %1, %c0_i32_0 : i32
    scf.if %2 {
      %cst = arith.constant 0.000000e+00 : f32
      %9 = vector.broadcast %cst : f32 to vector<2x512x1xf32>
      %c0_8 = arith.constant 0 : index
      %c0_9 = arith.constant 0 : index
      %c0_10 = arith.constant 0 : index
      %10 = vector.load %arg8[%c0_8, %c0_9, %c0_10] : memref<2x512x1xf32, #tpu.memory_space<vmem>>, vector<2x512x1xf32>
      tpu.vector_store %arg8[%c0_8, %c0_9, %c0_10], %9 {strides = array<i32>} : memref<2x512x1xf32, #tpu.memory_space<vmem>>, vector<2x512x1xf32>,
    } else {
    }
    %c0 = arith.constant 0 : index
    %c0_1 = arith.constant 0 : index
    %3 = vector.load %arg3[%c0, %c0_1] : memref<512x4xbf16, #tpu.memory_space<vmem>>, vector<512x4xbf16>
    %c0_2 = arith.constant 0 : index
    %c0_3 = arith.constant 0 : index
    %4 = vector.load %arg4[%c0_2, %c0_3] : memref<512x1xf32, #tpu.memory_space<vmem>>, vector<512x1xf32>
    %c0_i32_4 = arith.constant 0 : i32
    %c2_i32 = arith.constant 2 : i32
    %5 = arith.addi %c0_i32_4, %c2_i32 : i32
    %c1_i32 = arith.constant 1 : i32
    scf.for %arg9 = %c0_i32_4 to %5 step %c1_i32  : i32 {
      %9 = arith.index_cast %arg9 : i32 to index
      %c0_8 = arith.constant 0 : index
      %c0_9 = arith.constant 0 : index
      %10 = vector.load %arg2[%9, %c0_8, %c0_9] : memref<2x4x128xbf16, #tpu.memory_space<vmem>>, vector<1x4x128xbf16>
      %11 = vector.shape_cast %10 : vector<1x4x128xbf16> to vector<4x128xbf16>
      %cst = arith.constant dense<0.000000e+00> : vector<512x128xf32>
      %12 = tpu.matmul %3, %11, %cst {dimension_numbers = #tpu.dot_dimension_numbers<[1], [0], [0], [1], [0, 0, 1, 1], [], []>} : vector<512x4xbf16>, vector<4x128xbf16>, vector<512x128xf32> -> vector<512x128xf32>
      %13 = vector.broadcast %4 : vector<512x1xf32> to vector<512x128xf32>
      %14 = arith.addf %12, %13 : vector<512x128xf32>
      %cst_10 = arith.constant 0.000000e+00 : f32
      %15 = vector.broadcast %cst_10 : f32 to vector<512x128xf32>
      %16 = arith.maximumf %14, %15 : vector<512x128xf32>
      %17 = arith.index_cast %arg9 : i32 to index
      %c0_11 = arith.constant 0 : index
      %c0_12 = arith.constant 0 : index
      %18 = vector.load %arg8[%17, %c0_11, %c0_12] : memref<2x512x1xf32, #tpu.memory_space<vmem>>, vector<1x512x1xf32>
      %19 = vector.shape_cast %18 : vector<1x512x1xf32> to vector<512x1xf32>
      %cst_13 = arith.constant dense<0.000000e+00> : vector<512xf32>
      %20 = vector.multi_reduction <add>, %16, %cst_13 [1] : vector<512x128xf32> to vector<512xf32>
      %21 = vector.shape_cast %20 : vector<512xf32> to vector<512x1xf32>
      %22 = arith.addf %19, %21 : vector<512x1xf32>
      %23 = arith.index_cast %arg9 : i32 to index
      %c0_14 = arith.constant 0 : index
      %c0_15 = arith.constant 0 : index
      %24 = vector.load %arg8[%23, %c0_14, %c0_15] : memref<2x512x1xf32, #tpu.memory_space<vmem>>, vector<1x512x1xf32>
      %25 = vector.shape_cast %24 : vector<1x512x1xf32> to vector<512x1xf32>
      %26 = vector.shape_cast %22 : vector<512x1xf32> to vector<1x512x1xf32>
      tpu.vector_store %arg8[%23, %c0_14, %c0_15], %26 {strides = array<i32>} : memref<2x512x1xf32, #tpu.memory_space<vmem>>, vector<1x512x1xf32>,
    }
    %c2_i32_5 = arith.constant 2 : i32
    %c1_i32_6 = arith.constant 1 : i32
    %6 = arith.cmpi eq, %arg1, %c1_i32_6 : i32
    %7 = arith.extui %6 : i1 to i32
    %c0_i32_7 = arith.constant 0 : i32
    %8 = arith.cmpi ne, %7, %c0_i32_7 : i32
    scf.if %8 {
      %c0_8 = arith.constant 0 : index
      %c0_9 = arith.constant 0 : index
      %9 = vector.load %arg5[%c0_8, %c0_9] : memref<512x128xf32, #tpu.memory_space<vmem>>, vector<512x128xf32>
      %c0_10 = arith.constant 0 : index
      %c0_11 = arith.constant 0 : index
      %10 = vector.load %arg6[%c0_10, %c0_11] : memref<1x128xf32, #tpu.memory_space<vmem>>, vector<1x128xf32>
      %c0_i32_12 = arith.constant 0 : i32
      %c2_i32_13 = arith.constant 2 : i32
      %11 = arith.addi %c0_i32_12, %c2_i32_13 : i32
      %c1_i32_14 = arith.constant 1 : i32
      scf.for %arg9 = %c0_i32_12 to %11 step %c1_i32_14  : i32 {
        %12 = arith.index_cast %arg9 : i32 to index
        %c0_16 = arith.constant 0 : index
        %c0_17 = arith.constant 0 : index
        %13 = vector.load %arg8[%12, %c0_16, %c0_17] : memref<2x512x1xf32, #tpu.memory_space<vmem>>, vector<1x512x1xf32>
        %14 = vector.shape_cast %13 : vector<1x512x1xf32> to vector<512x1xf32>
        %cst = arith.constant 3.906250e-03 : f32
        %15 = vector.broadcast %cst : f32 to vector<512x1xf32>
        %16 = arith.mulf %14, %15 : vector<512x1xf32>
        %17 = vector.broadcast %16 : vector<512x1xf32> to vector<512x128xf32>
        %18 = arith.mulf %17, %9 : vector<512x128xf32>
        %cst_18 = arith.constant dense<0.000000e+00> : vector<128xf32>
        %19 = vector.multi_reduction <add>, %18, %cst_18 [0] : vector<512x128xf32> to vector<128xf32>
        %20 = vector.shape_cast %19 : vector<128xf32> to vector<1x128xf32>
        %21 = arith.addf %20, %10 : vector<1x128xf32>
        %cst_19 = arith.constant 0.000000e+00 : f32
        %22 = vector.broadcast %cst_19 : f32 to vector<1x128xf32>
        %23 = arith.subf %22, %21 : vector<1x128xf32>
        %24 = math.exp %23 : vector<1x128xf32>
        %cst_20 = arith.constant 1.000000e+00 : f32
        %25 = vector.broadcast %cst_20 : f32 to vector<1x128xf32>
        %26 = arith.addf %25, %24 : vector<1x128xf32>
        %27 = tpu.reciprocal %26 {approx = true} : vector<1x128xf32> -> vector<1x128xf32>
        %28 = arith.index_cast %arg9 : i32 to index
        %c0_21 = arith.constant 0 : index
        %29 = vector.load %arg7[%28, %c0_21] : memref<2x128xf32, #tpu.memory_space<vmem>>, vector<1x128xf32>
        tpu.vector_store %arg7[%28, %c0_21], %27 {strides = array<i32>} : memref<2x128xf32, #tpu.memory_space<vmem>>, vector<1x128xf32>,
      }
      %c2_i32_15 = arith.constant 2 : i32
    } else {
    }
    return
  }
  func.func @transform_0(%arg0: i32, %arg1: i32) -> (i32, i32, i32) {
    %c0_i32 = arith.constant 0 : i32
    %c0_i32_0 = arith.constant 0 : i32
    return %arg0, %c0_i32, %arg1 : i32, i32, i32
  }
  func.func @transform_1(%arg0: i32, %arg1: i32) -> (i32, i32) {
    %c0_i32 = arith.constant 0 : i32
    %c0_i32_0 = arith.constant 0 : i32
    %c0_i32_1 = arith.constant 0 : i32
    return %c0_i32, %c0_i32_0 : i32, i32
  }
  func.func @transform_2(%arg0: i32, %arg1: i32) -> (i32, i32) {
    %c0_i32 = arith.constant 0 : i32
    %c0_i32_0 = arith.constant 0 : i32
    %c0_i32_1 = arith.constant 0 : i32
    return %c0_i32, %c0_i32_0 : i32, i32
  }
  func.func @transform_3(%arg0: i32, %arg1: i32) -> (i32, i32) {
    %c0_i32 = arith.constant 0 : i32
    %c0_i32_0 = arith.constant 0 : i32
    %c0_i32_1 = arith.constant 0 : i32
    return %c0_i32, %c0_i32_0 : i32, i32
  }
  func.func @transform_4(%arg0: i32, %arg1: i32) -> (i32, i32) {
    %c0_i32 = arith.constant 0 : i32
    %c0_i32_0 = arith.constant 0 : i32
    %c0_i32_1 = arith.constant 0 : i32
    return %c0_i32, %c0_i32_0 : i32, i32
  }
  func.func @transform_5(%arg0: i32, %arg1: i32) -> (i32, i32) {
    %c0_i32 = arith.constant 0 : i32
    %c0_i32_0 = arith.constant 0 : i32
    return %arg0, %c0_i32 : i32, i32
  }
}

</mosaic_0001>

<llo_original>
// kernel: tpu_custom_call.1
$region0: #{tpu_custom_call.1}
  #allocation0 [shape = 'u32[]', space=smem, size = 0x4, offset = 0x4, fixed_abs, tag = 'smem constant byte address 0x4 - core index']
  #allocation1 [shape = 'u32[144,128]{1,0:T(1,128)}', space=vmem, size = 0x12000, scoped, tag = 'internal scratch']
  #allocation2 [shape = 'f32[2,512,1]{2,1,0:T(8,128)}', space=vmem, size = 0x80000, scoped, tag = 'scratch operand']
  %s0 = inlined_call_operand.vmem [shape: bf16[2,4,256], index: 0, kind: input, shape index: {}]
  %s1 = inlined_call_operand.vmem [shape: bf16[512,4], index: 1, kind: input, shape index: {}]
  %s2 = inlined_call_operand.vmem [shape: f32[512,1], index: 2, kind: input, shape index: {}]
  %s3 = inlined_call_operand.vmem [shape: f32[512,128], index: 3, kind: input, shape index: {}]
  %s4 = inlined_call_operand.vmem [shape: f32[1,128], index: 4, kind: input, shape index: {}]
  %s5 = inlined_call_operand.hbm [shape: f32[2,128], index: 5, kind: output, shape index: {}]
  %s6 = sld [smem:[#allocation0]]
  $region109: #{tpu_custom_call.1} parent=0
    _
  %s8 = ssub.s32 1, %s6
  %s9 = scalar_select 0, %s8, %s6
  $region1: #{tpu_custom_call.1} parent=0
    #allocation3 [shape = 'u8[4096]{0}', space=vmem, size = 0x1000, scoped, tag = 'input window, operand 0']
    #allocation4 [shape = 'u8[1024]{0}', space=vmem, size = 0x400, scoped, tag = 'output window, operand 0, single buffered']
    #allocation5 [shape = 's32[2]{0}', space=sflag, size = 0x8, scoped, tag = 'scoped memory for tpu_custom_call.1']
    %10 = vsyncpa [#allocation5], 0
    loop: start=0, step=1, limit=4
    $region2: #{tpu_custom_call.1} parent=1 // loop_pre_header
      _
    $region3: #{tpu_custom_call.1} parent=1 // loop_header
      %s12 = sphi 0, %s16
      %p13 = scmp.ge.s32.totalorder %s12, 4
      %s19 = sphi 0, %s31
      %s20 = sphi 0, %s27
      %s21 = sphi 0, %s19
      %s22 = sphi 0, %s20
      %s23 = sphi 0, %s21
      %s24 = sphi 0, %s22
      %s36 = sphi 0, %s38
      %s39 = sphi 0, %s36
      %s40 = sphi 0, %s39
      %s56 = sphi 0, %s40
      %s60 = sphi 0, %s60
      %s62 = sphi 0, %s60
      %s63 = sphi 0, %s62
      %s77 = sphi 0, %s63
      %s81 = sphi 0, %s81
      %s83 = sphi 0, %s81
      %s84 = sphi 0, %s83
      %s98 = sphi 0, %s84
      %s102 = sphi 0, %s102
      %s104 = sphi 0, %s102
      %s105 = sphi 0, %s104
      %s119 = sphi 0, %s105
      %s123 = sphi 0, %s123
      %s125 = sphi 0, %s123
      %s126 = sphi 0, %s125
      %s140 = sphi 0, %s126
      %s146 = sphi 0, %s148
      %s149 = sphi 0, %s146
      %s150 = sphi 0, %s149
      %s166 = sphi 0, %s150
    $region4: #{tpu_custom_call.1} parent=1 // loop_header_branch
      %15 = sbr.rel (%p13) target = $region8
    $region5: #{tpu_custom_call.1} parent=1 // loop_body
      %s17 = ssub.s32 %s12, 1
      %s18 = ssub.s32 %s12, 2
      %s25 = sadd.s32 1, %s20
      %p26 = scmp.ge.s32.totalorder %s25, 2
      %s27 = scalar_select %p26, 0, %s25
      %s28 = sadd.s32 1, %s19
      %s29 = scalar_select %p26, %s28, %s19
      %p30 = scmp.ge.s32.totalorder %s29, 1
      %s31 = scalar_select %p30, 0, %s29
      %s32 = ssub.s32 %s19, %s31
      %s33 = ssub.s32 %s20, %s27
      %s34 = sor.u32 %s32, %s33
      %p35 = scmp.eq.s32.totalorder %s34, 0
      %s37 = sadd.s32 %s36, 1
      %s38 = scalar_select %p35, %s36, %s37
      %p41 = pneg %p35
      %p42 = scmp.eq.s32.totalorder %s12, 1
      %p43 = por %p41, %p42
      %p44 = scmp.ne.s32.totalorder %s36, %s39
      %p45 = scmp.eq.s32.totalorder %s12, 0
      %p46 = por %p44, %p45
      %p47 = scmp.ne.s32.totalorder %s36, %s39
      %p48 = scmp.eq.s32.totalorder %s17, 1
      %p49 = por %p47, %p48
      %p50 = scmp.ne.s32.totalorder %s39, %s40
      %p51 = scmp.eq.s32.totalorder %s17, 0
      %p52 = por %p50, %p51
      %p53 = scmp.ne.s32.totalorder %s39, %s40
      %p54 = scmp.eq.s32.totalorder %s18, 1
      %p55 = por %p53, %p54
      %p57 = scmp.ne.s32.totalorder %s40, %s56
      %p58 = scmp.eq.s32.totalorder %s18, 0
      %p59 = por %p57, %p58
      %s61 = sadd.s32 %s60, 1
      %p64 = scmp.eq.s32.totalorder %s12, 1
      %p65 = scmp.ne.s32.totalorder %s60, %s62
      %p66 = scmp.eq.s32.totalorder %s12, 0
      %p67 = por %p65, %p66
      %p68 = scmp.ne.s32.totalorder %s60, %s62
      %p69 = scmp.eq.s32.totalorder %s17, 1
      %p70 = por %p68, %p69
      %p71 = scmp.ne.s32.totalorder %s62, %s63
      %p72 = scmp.eq.s32.totalorder %s17, 0
      %p73 = por %p71, %p72
      %p74 = scmp.ne.s32.totalorder %s62, %s63
      %p75 = scmp.eq.s32.totalorder %s18, 1
      %p76 = por %p74, %p75
      %p78 = scmp.ne.s32.totalorder %s63, %s77
      %p79 = scmp.eq.s32.totalorder %s18, 0
      %p80 = por %p78, %p79
      %s82 = sadd.s32 %s81, 1
      %p85 = scmp.eq.s32.totalorder %s12, 1
      %p86 = scmp.ne.s32.totalorder %s81, %s83
      %p87 = scmp.eq.s32.totalorder %s12, 0
      %p88 = por %p86, %p87
      %p89 = scmp.ne.s32.totalorder %s81, %s83
      %p90 = scmp.eq.s32.totalorder %s17, 1
      %p91 = por %p89, %p90
      %p92 = scmp.ne.s32.totalorder %s83, %s84
      %p93 = scmp.eq.s32.totalorder %s17, 0
      %p94 = por %p92, %p93
      %p95 = scmp.ne.s32.totalorder %s83, %s84
      %p96 = scmp.eq.s32.totalorder %s18, 1
      %p97 = por %p95, %p96
      %p99 = scmp.ne.s32.totalorder %s84, %s98
      %p100 = scmp.eq.s32.totalorder %s18, 0
      %p101 = por %p99, %p100
      %s103 = sadd.s32 %s102, 1
      %p106 = scmp.eq.s32.totalorder %s12, 1
      %p107 = scmp.ne.s32.totalorder %s102, %s104
      %p108 = scmp.eq.s32.totalorder %s12, 0
      %p109 = por %p107, %p108
      %p110 = scmp.ne.s32.totalorder %s102, %s104
      %p111 = scmp.eq.s32.totalorder %s17, 1
      %p112 = por %p110, %p111
      %p113 = scmp.ne.s32.totalorder %s104, %s105
      %p114 = scmp.eq.s32.totalorder %s17, 0
      %p115 = por %p113, %p114
      %p116 = scmp.ne.s32.totalorder %s104, %s105
      %p117 = scmp.eq.s32.totalorder %s18, 1
      %p118 = por %p116, %p117
      %p120 = scmp.ne.s32.totalorder %s105, %s119
      %p121 = scmp.eq.s32.totalorder %s18, 0
      %p122 = por %p120, %p121
      %s124 = sadd.s32 %s123, 1
      %p127 = scmp.eq.s32.totalorder %s12, 1
      %p128 = scmp.ne.s32.totalorder %s123, %s125
      %p129 = scmp.eq.s32.totalorder %s12, 0
      %p130 = por %p128, %p129
      %p131 = scmp.ne.s32.totalorder %s123, %s125
      %p132 = scmp.eq.s32.totalorder %s17, 1
      %p133 = por %p131, %p132
      %p134 = scmp.ne.s32.totalorder %s125, %s126
      %p135 = scmp.eq.s32.totalorder %s17, 0
      %p136 = por %p134, %p135
      %p137 = scmp.ne.s32.totalorder %s125, %s126
      %p138 = scmp.eq.s32.totalorder %s18, 1
      %p139 = por %p137, %p138
      %p141 = scmp.ne.s32.totalorder %s126, %s140
      %p142 = scmp.eq.s32.totalorder %s18, 0
      %p143 = por %p141, %p142
      %s144 = ssub.s32 %s19, %s31
      %p145 = scmp.eq.s32.totalorder %s144, 0
      %s147 = sadd.s32 %s146, 1
      %s148 = scalar_select %p145, %s146, %s147
      %p151 = pneg %p145
      %p152 = scmp.eq.s32.totalorder %s12, 1
      %p153 = por %p151, %p152
      %p154 = scmp.ne.s32.totalorder %s146, %s149
      %p155 = scmp.eq.s32.totalorder %s12, 0
      %p156 = por %p154, %p155
      %p157 = scmp.ne.s32.totalorder %s146, %s149
      %p158 = scmp.eq.s32.totalorder %s17, 1
      %p159 = por %p157, %p158
      %p160 = scmp.ne.s32.totalorder %s149, %s150
      %p161 = scmp.eq.s32.totalorder %s17, 0
      %p162 = por %p160, %p161
      %p163 = scmp.ne.s32.totalorder %s149, %s150
      %p164 = scmp.eq.s32.totalorder %s18, 1
      %p165 = por %p163, %p164
      %p167 = scmp.ne.s32.totalorder %s150, %s166
      %p168 = scmp.eq.s32.totalorder %s18, 0
      %p169 = por %p167, %p168
      %p170 = scmp.le.s32.totalorder 1, %s12
      %p171 = scmp.lt.s32.totalorder %s12, 3
      %p172 = pnand %p170, %p171
      %p173 = pneg %p172
      // Predicated region
      $region9: #{tpu_custom_call.1} parent=5 // pred_check
        _
      $region10: #{tpu_custom_call.1} parent=5 // pred_check_branch
        %175 = sbr.rel (%p172) target = $region12
      $region11: #{tpu_custom_call.1} parent=5 // pred_region
        %s176 = ssub.s32 %s12, 1
        // Predicated region
        $region13: #{tpu_custom_call.1} parent=11 // pred_check
          %p177 = pneg %p73
        $region14: #{tpu_custom_call.1} parent=11 // pred_check_branch
          %179 = sbr.rel (%p177) target = $region16
        $region15: #{tpu_custom_call.1} parent=11 // pred_region
          _
        $region16: #{tpu_custom_call.1} parent=11 // pred_fallthru
          _
        // Predicated region
        $region17: #{tpu_custom_call.1} parent=11 // pred_check
          %p180 = pneg %p94
        $region18: #{tpu_custom_call.1} parent=11 // pred_check_branch
          %182 = sbr.rel (%p180) target = $region20
        $region19: #{tpu_custom_call.1} parent=11 // pred_region
          _
        $region20: #{tpu_custom_call.1} parent=11 // pred_fallthru
          _
        // Predicated region
        $region21: #{tpu_custom_call.1} parent=11 // pred_check
          %p183 = pneg %p115
        $region22: #{tpu_custom_call.1} parent=11 // pred_check_branch
          %185 = sbr.rel (%p183) target = $region24
        $region23: #{tpu_custom_call.1} parent=11 // pred_region
          _
        $region24: #{tpu_custom_call.1} parent=11 // pred_fallthru
          _
        // Predicated region
        $region25: #{tpu_custom_call.1} parent=11 // pred_check
          %p186 = pneg %p136
        $region26: #{tpu_custom_call.1} parent=11 // pred_check_branch
          %188 = sbr.rel (%p186) target = $region28
        $region27: #{tpu_custom_call.1} parent=11 // pred_region
          _
        $region28: #{tpu_custom_call.1} parent=11 // pred_fallthru
          _
      $region12: #{tpu_custom_call.1} parent=5 // pred_fallthru
        _
      %p189 = scmp.lt.s32.totalorder %s12, 2
      // Predicated region
      $region29: #{tpu_custom_call.1} parent=5 // pred_check
        %p190 = pneg %p189
      $region30: #{tpu_custom_call.1} parent=5 // pred_check_branch
        %192 = sbr.rel (%p190) target = $region32
      $region31: #{tpu_custom_call.1} parent=5 // pred_region
        // Predicated region
        $region33: #{tpu_custom_call.1} parent=31 // pred_check
          %p193 = pneg %p46
        $region34: #{tpu_custom_call.1} parent=31 // pred_check_branch
          %195 = sbr.rel (%p193) target = $region36
        $region35: #{tpu_custom_call.1} parent=31 // pred_region
          %s196 = sand.u32 %s36, 1
          %s197 = sand.u32 %s36, 1
          %s198 = smul.addr %s197, 4
          %s199 = scalar_lea.vmem [#allocation3], %s198
          %s200 = smul.u32 2, %s19
          %s201 = smul.addr %s200, 2
          %s202 = sadd.s32 %s20, %s201
          %s203 = smul.addr %s202, 2
          %s204 = scalar_lea.vmem %s0, %s203
          // Predicated region
          $region37: #{tpu_custom_call.1} parent=35 // pred_check
            _
          $region38: #{tpu_custom_call.1} parent=35 // pred_check_branch
            %206 = sbr.rel (0) target = $region40
          $region39: #{tpu_custom_call.1} parent=35 // pred_region
            // Predicated region
            $region41: #{tpu_custom_call.1} parent=39 // pred_check
              _
            $region42: #{tpu_custom_call.1} parent=39 // pred_check_branch
              %208 = sbr.rel target = $region44
            $region43: #{tpu_custom_call.1} parent=39 // pred_region
              // Predicated region
              $region56: #{tpu_custom_call.1} parent=43 // pred_check
                _
              $region57: #{tpu_custom_call.1} parent=43 // pred_check_branch
                %226 = sbr.rel (0) target = $region59
              $region58: #{tpu_custom_call.1} parent=43 // pred_region
                %s228 = ssub.s32 4, 1
                loop: start=0, step=1, limit=1
                $region60: #{tpu_custom_call.1} parent=58 // loop_pre_header
                  _
                $region61: #{tpu_custom_call.1} parent=58 // loop_header
                  %s230 = sphi 0, %s234
                  %p231 = scmp.ge.s32.totalorder %s230, 1
                  %s235 = sphi %s204, %s204
                  %s236 = sphi %s199, %s199
                $region62: #{tpu_custom_call.1} parent=58 // loop_header_branch
                  %233 = sbr.rel (%p231) target = $region66
                $region63: #{tpu_custom_call.1} parent=58 // loop_body
                  %v237 = vld [vmem:[%s235] sm:%s228]
                  %238 = vst [vmem:[%s236] sm:%s228] %v237
                  %v239 = vld [vmem:[%s235 + $0x4] sm:%s228]
                  %240 = vst [vmem:[%s236 + $0x2] sm:%s228] %v239
                $region64: #{tpu_custom_call.1} parent=58 // loop_footer
                  %s234 = sadd.s32 1, %s230
                $region65: #{tpu_custom_call.1} parent=58 // loop_footer_branch
                  %229 = sbr.rel target = $region61
                $region66: #{tpu_custom_call.1} parent=58 // loop_exit
                  _
              $region59: #{tpu_custom_call.1} parent=43 // pred_fallthru
                _
            $region44: #{tpu_custom_call.1} parent=39 // pred_fallthru
              _
            // Predicated region
            $region45: #{tpu_custom_call.1} parent=39 // pred_check
              _
            $region46: #{tpu_custom_call.1} parent=39 // pred_check_branch
              %210 = sbr.rel (0) target = $region48
            $region47: #{tpu_custom_call.1} parent=39 // pred_region
              %s212 = ssub.s32 4, 1
              loop: start=0, step=1, limit=1
              $region49: #{tpu_custom_call.1} parent=47 // loop_pre_header
                _
              $region50: #{tpu_custom_call.1} parent=47 // loop_header
                %s214 = sphi 0, %s218
                %p215 = scmp.ge.s32.totalorder %s214, 1
                %s219 = sphi %s204, %s204
                %s220 = sphi %s199, %s199
              $region51: #{tpu_custom_call.1} parent=47 // loop_header_branch
                %217 = sbr.rel (%p215) target = $region55
              $region52: #{tpu_custom_call.1} parent=47 // loop_body
                %v221 = vld [vmem:[%s219] sm:%s212]
                %222 = vst [vmem:[%s220] sm:%s212] %v221
                %v223 = vld [vmem:[%s219 + $0x4] sm:%s212]
                %224 = vst [vmem:[%s220 + $0x2] sm:%s212] %v223
              $region53: #{tpu_custom_call.1} parent=47 // loop_footer
                %s218 = sadd.s32 1, %s214
              $region54: #{tpu_custom_call.1} parent=47 // loop_footer_branch
                %213 = sbr.rel target = $region50
              $region55: #{tpu_custom_call.1} parent=47 // loop_exit
                _
            $region48: #{tpu_custom_call.1} parent=39 // pred_fallthru
              _
          $region40: #{tpu_custom_call.1} parent=35 // pred_fallthru
            _
          %241 = vnop
        $region36: #{tpu_custom_call.1} parent=31 // pred_fallthru
          _
      $region32: #{tpu_custom_call.1} parent=5 // pred_fallthru
        _
      %p242 = scmp.le.s32.totalorder 1, %s12
      %p243 = scmp.lt.s32.totalorder %s12, 3
      %p244 = pnand %p242, %p243
      %p245 = pneg %p244
      // Predicated region
      $region67: #{tpu_custom_call.1} parent=5 // pred_check
        _
      $region68: #{tpu_custom_call.1} parent=5 // pred_check_branch
        %247 = sbr.rel (%p244) target = $region70
      $region69: #{tpu_custom_call.1} parent=5 // pred_region
        %s248 = ssub.s32 %s12, 1
        %s249 = sand.u32 %s39, 1
        %s250 = sand.u32 %s39, 1
        %s251 = smul.addr %s250, 4
        %s252 = scalar_lea.vmem [#allocation3], %s251
        // Predicated region
        $region71: #{tpu_custom_call.1} parent=69 // pred_check
          %p253 = pneg %p52
        $region72: #{tpu_custom_call.1} parent=69 // pred_check_branch
          %255 = sbr.rel (%p253) target = $region74
        $region73: #{tpu_custom_call.1} parent=69 // pred_region
          _
        $region74: #{tpu_custom_call.1} parent=69 // pred_fallthru
          _
        %s256 = sand.u32 %s39, 1
        %s257 = sand.u32 %s39, 1
        %s258 = smul.addr %s257, 4
        %s259 = scalar_lea.vmem [#allocation3], %s258
        %p260 = pneg %p52
        %p261 = pneg %p49
        %p262 = pneg %p73
        %p263 = pneg %p70
        %p264 = pneg %p94
        %p265 = pneg %p91
        %p266 = pneg %p115
        %p267 = pneg %p112
        %p268 = pneg %p136
        %p269 = pneg %p133
        %p270 = pneg %p162
        %p271 = pneg %p159
        %s272 = smul.u32 2, %s21
        %p274 = scmp.eq.s32.totalorder %s22, 0
        // Predicated region
        $region75: #{tpu_custom_call.1} parent=69 // pred_check
          %p275 = pneg %p274
        $region76: #{tpu_custom_call.1} parent=69 // pred_check_branch
          %277 = sbr.rel (%p275) target = $region78
        $region77: #{tpu_custom_call.1} parent=69 // pred_region
          %vm278 = vcmask 7168
          %279 = vst.msk [vmem:[#allocation2] sm:$0xff] %vm278, 0.0
          %280 = vst.msk [vmem:[#allocation2 + $0x8] sm:$0xff] %vm278, 0.0
          %281 = vst.msk [vmem:[#allocation2 + $0x10] sm:$0xff] %vm278, 0.0
          %282 = vst.msk [vmem:[#allocation2 + $0x18] sm:$0xff] %vm278, 0.0
          %283 = vst.msk [vmem:[#allocation2 + $0x20] sm:$0xff] %vm278, 0.0
          %284 = vst.msk [vmem:[#allocation2 + $0x28] sm:$0xff] %vm278, 0.0
          %285 = vst.msk [vmem:[#allocation2 + $0x30] sm:$0xff] %vm278, 0.0
          %286 = vst.msk [vmem:[#allocation2 + $0x38] sm:$0xff] %vm278, 0.0
          %287 = vst.msk [vmem:[#allocation2 + $0x40] sm:$0xff] %vm278, 0.0
          %288 = vst.msk [vmem:[#allocation2 + $0x48] sm:$0xff] %vm278, 0.0
          %289 = vst.msk [vmem:[#allocation2 + $0x50] sm:$0xff] %vm278, 0.0
          %290 = vst.msk [vmem:[#allocation2 + $0x58] sm:$0xff] %vm278, 0.0
          %291 = vst.msk [vmem:[#allocation2 + $0x60] sm:$0xff] %vm278, 0.0
          %292 = vst.msk [vmem:[#allocation2 + $0x68] sm:$0xff] %vm278, 0.0
          %293 = vst.msk [vmem:[#allocation2 + $0x70] sm:$0xff] %vm278, 0.0
          %294 = vst.msk [vmem:[#allocation2 + $0x78] sm:$0xff] %vm278, 0.0
          %295 = vst.msk [vmem:[#allocation2 + $0x80] sm:$0xff] %vm278, 0.0
          %296 = vst.msk [vmem:[#allocation2 + $0x88] sm:$0xff] %vm278, 0.0
          %297 = vst.msk [vmem:[#allocation2 + $0x90] sm:$0xff] %vm278, 0.0
          %298 = vst.msk [vmem:[#allocation2 + $0x98] sm:$0xff] %vm278, 0.0
          %299 = vst.msk [vmem:[#allocation2 + $0xa0] sm:$0xff] %vm278, 0.0
          %300 = vst.msk [vmem:[#allocation2 + $0xa8] sm:$0xff] %vm278, 0.0
          %301 = vst.msk [vmem:[#allocation2 + $0xb0] sm:$0xff] %vm278, 0.0
          %302 = vst.msk [vmem:[#allocation2 + $0xb8] sm:$0xff] %vm278, 0.0
          %303 = vst.msk [vmem:[#allocation2 + $0xc0] sm:$0xff] %vm278, 0.0
          %304 = vst.msk [vmem:[#allocation2 + $0xc8] sm:$0xff] %vm278, 0.0
          %305 = vst.msk [vmem:[#allocation2 + $0xd0] sm:$0xff] %vm278, 0.0
          %306 = vst.msk [vmem:[#allocation2 + $0xd8] sm:$0xff] %vm278, 0.0
          %307 = vst.msk [vmem:[#allocation2 + $0xe0] sm:$0xff] %vm278, 0.0
          %308 = vst.msk [vmem:[#allocation2 + $0xe8] sm:$0xff] %vm278, 0.0
          %309 = vst.msk [vmem:[#allocation2 + $0xf0] sm:$0xff] %vm278, 0.0
          %310 = vst.msk [vmem:[#allocation2 + $0xf8] sm:$0xff] %vm278, 0.0
          %311 = vst.msk [vmem:[#allocation2 + $0x100] sm:$0xff] %vm278, 0.0
          %312 = vst.msk [vmem:[#allocation2 + $0x108] sm:$0xff] %vm278, 0.0
          %313 = vst.msk [vmem:[#allocation2 + $0x110] sm:$0xff] %vm278, 0.0
          %314 = vst.msk [vmem:[#allocation2 + $0x118] sm:$0xff] %vm278, 0.0
          %315 = vst.msk [vmem:[#allocation2 + $0x120] sm:$0xff] %vm278, 0.0
          %316 = vst.msk [vmem:[#allocation2 + $0x128] sm:$0xff] %vm278, 0.0
          %317 = vst.msk [vmem:[#allocation2 + $0x130] sm:$0xff] %vm278, 0.0
          %318 = vst.msk [vmem:[#allocation2 + $0x138] sm:$0xff] %vm278, 0.0
          %319 = vst.msk [vmem:[#allocation2 + $0x140] sm:$0xff] %vm278, 0.0
          %320 = vst.msk [vmem:[#allocation2 + $0x148] sm:$0xff] %vm278, 0.0
          %321 = vst.msk [vmem:[#allocation2 + $0x150] sm:$0xff] %vm278, 0.0
          %322 = vst.msk [vmem:[#allocation2 + $0x158] sm:$0xff] %vm278, 0.0
          %323 = vst.msk [vmem:[#allocation2 + $0x160] sm:$0xff] %vm278, 0.0
          %324 = vst.msk [vmem:[#allocation2 + $0x168] sm:$0xff] %vm278, 0.0
          %325 = vst.msk [vmem:[#allocation2 + $0x170] sm:$0xff] %vm278, 0.0
          %326 = vst.msk [vmem:[#allocation2 + $0x178] sm:$0xff] %vm278, 0.0
          %327 = vst.msk [vmem:[#allocation2 + $0x180] sm:$0xff] %vm278, 0.0
          %328 = vst.msk [vmem:[#allocation2 + $0x188] sm:$0xff] %vm278, 0.0
          %329 = vst.msk [vmem:[#allocation2 + $0x190] sm:$0xff] %vm278, 0.0
          %330 = vst.msk [vmem:[#allocation2 + $0x198] sm:$0xff] %vm278, 0.0
          %331 = vst.msk [vmem:[#allocation2 + $0x1a0] sm:$0xff] %vm278, 0.0
          %332 = vst.msk [vmem:[#allocation2 + $0x1a8] sm:$0xff] %vm278, 0.0
          %333 = vst.msk [vmem:[#allocation2 + $0x1b0] sm:$0xff] %vm278, 0.0
          %334 = vst.msk [vmem:[#allocation2 + $0x1b8] sm:$0xff] %vm278, 0.0
          %335 = vst.msk [vmem:[#allocation2 + $0x1c0] sm:$0xff] %vm278, 0.0
          %336 = vst.msk [vmem:[#allocation2 + $0x1c8] sm:$0xff] %vm278, 0.0
          %337 = vst.msk [vmem:[#allocation2 + $0x1d0] sm:$0xff] %vm278, 0.0
          %338 = vst.msk [vmem:[#allocation2 + $0x1d8] sm:$0xff] %vm278, 0.0
          %339 = vst.msk [vmem:[#allocation2 + $0x1e0] sm:$0xff] %vm278, 0.0
          %340 = vst.msk [vmem:[#allocation2 + $0x1e8] sm:$0xff] %vm278, 0.0
          %341 = vst.msk [vmem:[#allocation2 + $0x1f0] sm:$0xff] %vm278, 0.0
          %342 = vst.msk [vmem:[#allocation2 + $0x1f8] sm:$0xff] %vm278, 0.0
          %343 = vst.msk [vmem:[#allocation2 + $0x200] sm:$0xff] %vm278, 0.0
          %344 = vst.msk [vmem:[#allocation2 + $0x208] sm:$0xff] %vm278, 0.0
          %345 = vst.msk [vmem:[#allocation2 + $0x210] sm:$0xff] %vm278, 0.0
          %346 = vst.msk [vmem:[#allocation2 + $0x218] sm:$0xff] %vm278, 0.0
          %347 = vst.msk [vmem:[#allocation2 + $0x220] sm:$0xff] %vm278, 0.0
          %348 = vst.msk [vmem:[#allocation2 + $0x228] sm:$0xff] %vm278, 0.0
          %349 = vst.msk [vmem:[#allocation2 + $0x230] sm:$0xff] %vm278, 0.0
          %350 = vst.msk [vmem:[#allocation2 + $0x238] sm:$0xff] %vm278, 0.0
          %351 = vst.msk [vmem:[#allocation2 + $0x240] sm:$0xff] %vm278, 0.0
          %352 = vst.msk [vmem:[#allocation2 + $0x248] sm:$0xff] %vm278, 0.0
          %353 = vst.msk [vmem:[#allocation2 + $0x250] sm:$0xff] %vm278, 0.0
          %354 = vst.msk [vmem:[#allocation2 + $0x258] sm:$0xff] %vm278, 0.0
          %355 = vst.msk [vmem:[#allocation2 + $0x260] sm:$0xff] %vm278, 0.0
          %356 = vst.msk [vmem:[#allocation2 + $0x268] sm:$0xff] %vm278, 0.0
          %357 = vst.msk [vmem:[#allocation2 + $0x270] sm:$0xff] %vm278, 0.0
          %358 = vst.msk [vmem:[#allocation2 + $0x278] sm:$0xff] %vm278, 0.0
          %359 = vst.msk [vmem:[#allocation2 + $0x280] sm:$0xff] %vm278, 0.0
          %360 = vst.msk [vmem:[#allocation2 + $0x288] sm:$0xff] %vm278, 0.0
          %361 = vst.msk [vmem:[#allocation2 + $0x290] sm:$0xff] %vm278, 0.0
          %362 = vst.msk [vmem:[#allocation2 + $0x298] sm:$0xff] %vm278, 0.0
          %363 = vst.msk [vmem:[#allocation2 + $0x2a0] sm:$0xff] %vm278, 0.0
          %364 = vst.msk [vmem:[#allocation2 + $0x2a8] sm:$0xff] %vm278, 0.0
          %365 = vst.msk [vmem:[#allocation2 + $0x2b0] sm:$0xff] %vm278, 0.0
          %366 = vst.msk [vmem:[#allocation2 + $0x2b8] sm:$0xff] %vm278, 0.0
          %367 = vst.msk [vmem:[#allocation2 + $0x2c0] sm:$0xff] %vm278, 0.0
          %368 = vst.msk [vmem:[#allocation2 + $0x2c8] sm:$0xff] %vm278, 0.0
          %369 = vst.msk [vmem:[#allocation2 + $0x2d0] sm:$0xff] %vm278, 0.0
          %370 = vst.msk [vmem:[#allocation2 + $0x2d8] sm:$0xff] %vm278, 0.0
          %371 = vst.msk [vmem:[#allocation2 + $0x2e0] sm:$0xff] %vm278, 0.0
          %372 = vst.msk [vmem:[#allocation2 + $0x2e8] sm:$0xff] %vm278, 0.0
          %373 = vst.msk [vmem:[#allocation2 + $0x2f0] sm:$0xff] %vm278, 0.0
          %374 = vst.msk [vmem:[#allocation2 + $0x2f8] sm:$0xff] %vm278, 0.0
          %375 = vst.msk [vmem:[#allocation2 + $0x300] sm:$0xff] %vm278, 0.0
          %376 = vst.msk [vmem:[#allocation2 + $0x308] sm:$0xff] %vm278, 0.0
          %377 = vst.msk [vmem:[#allocation2 + $0x310] sm:$0xff] %vm278, 0.0
          %378 = vst.msk [vmem:[#allocation2 + $0x318] sm:$0xff] %vm278, 0.0
          %379 = vst.msk [vmem:[#allocation2 + $0x320] sm:$0xff] %vm278, 0.0
          %380 = vst.msk [vmem:[#allocation2 + $0x328] sm:$0xff] %vm278, 0.0
          %381 = vst.msk [vmem:[#allocation2 + $0x330] sm:$0xff] %vm278, 0.0
          %382 = vst.msk [vmem:[#allocation2 + $0x338] sm:$0xff] %vm278, 0.0
          %383 = vst.msk [vmem:[#allocation2 + $0x340] sm:$0xff] %vm278, 0.0
          %384 = vst.msk [vmem:[#allocation2 + $0x348] sm:$0xff] %vm278, 0.0
          %385 = vst.msk [vmem:[#allocation2 + $0x350] sm:$0xff] %vm278, 0.0
          %386 = vst.msk [vmem:[#allocation2 + $0x358] sm:$0xff] %vm278, 0.0
          %387 = vst.msk [vmem:[#allocation2 + $0x360] sm:$0xff] %vm278, 0.0
          %388 = vst.msk [vmem:[#allocation2 + $0x368] sm:$0xff] %vm278, 0.0
          %389 = vst.msk [vmem:[#allocation2 + $0x370] sm:$0xff] %vm278, 0.0
          %390 = vst.msk [vmem:[#allocation2 + $0x378] sm:$0xff] %vm278, 0.0
          %391 = vst.msk [vmem:[#allocation2 + $0x380] sm:$0xff] %vm278, 0.0
          %392 = vst.msk [vmem:[#allocation2 + $0x388] sm:$0xff] %vm278, 0.0
          %393 = vst.msk [vmem:[#allocation2 + $0x390] sm:$0xff] %vm278, 0.0
          %394 = vst.msk [vmem:[#allocation2 + $0x398] sm:$0xff] %vm278, 0.0
          %395 = vst.msk [vmem:[#allocation2 + $0x3a0] sm:$0xff] %vm278, 0.0
          %396 = vst.msk [vmem:[#allocation2 + $0x3a8] sm:$0xff] %vm278, 0.0
          %397 = vst.msk [vmem:[#allocation2 + $0x3b0] sm:$0xff] %vm278, 0.0
          %398 = vst.msk [vmem:[#allocation2 + $0x3b8] sm:$0xff] %vm278, 0.0
          %399 = vst.msk [vmem:[#allocation2 + $0x3c0] sm:$0xff] %vm278, 0.0
          %400 = vst.msk [vmem:[#allocation2 + $0x3c8] sm:$0xff] %vm278, 0.0
          %401 = vst.msk [vmem:[#allocation2 + $0x3d0] sm:$0xff] %vm278, 0.0
          %402 = vst.msk [vmem:[#allocation2 + $0x3d8] sm:$0xff] %vm278, 0.0
          %403 = vst.msk [vmem:[#allocation2 + $0x3e0] sm:$0xff] %vm278, 0.0
          %404 = vst.msk [vmem:[#allocation2 + $0x3e8] sm:$0xff] %vm278, 0.0
          %405 = vst.msk [vmem:[#allocation2 + $0x3f0] sm:$0xff] %vm278, 0.0
          %406 = vst.msk [vmem:[#allocation2 + $0x3f8] sm:$0xff] %vm278, 0.0
        $region78: #{tpu_custom_call.1} parent=69 // pred_fallthru
          _
        %v407 = vld [vmem:[%s1] sm:$0xf]
        %v408 = vld [vmem:[%s1 + $0x4] sm:$0xf]
        %v409 = vld [vmem:[%s1 + $0x8] sm:$0xf]
        %v410 = vld [vmem:[%s1 + $0xc] sm:$0xf]
        %v411 = vld [vmem:[%s1 + $0x10] sm:$0xf]
        %v412 = vld [vmem:[%s1 + $0x14] sm:$0xf]
        %v413 = vld [vmem:[%s1 + $0x18] sm:$0xf]
        %v414 = vld [vmem:[%s1 + $0x1c] sm:$0xf]
        %v415 = vld [vmem:[%s1 + $0x20] sm:$0xf]
        %v416 = vld [vmem:[%s1 + $0x24] sm:$0xf]
        %v417 = vld [vmem:[%s1 + $0x28] sm:$0xf]
        %v418 = vld [vmem:[%s1 + $0x2c] sm:$0xf]
        %v419 = vld [vmem:[%s1 + $0x30] sm:$0xf]
        %v420 = vld [vmem:[%s1 + $0x34] sm:$0xf]
        %v421 = vld [vmem:[%s1 + $0x38] sm:$0xf]
        %v422 = vld [vmem:[%s1 + $0x3c] sm:$0xf]
        %v423 = vld [vmem:[%s1 + $0x40] sm:$0xf]
        %v424 = vld [vmem:[%s1 + $0x44] sm:$0xf]
        %v425 = vld [vmem:[%s1 + $0x48] sm:$0xf]
        %v426 = vld [vmem:[%s1 + $0x4c] sm:$0xf]
        %v427 = vld [vmem:[%s1 + $0x50] sm:$0xf]
        %v428 = vld [vmem:[%s1 + $0x54] sm:$0xf]
        %v429 = vld [vmem:[%s1 + $0x58] sm:$0xf]
        %v430 = vld [vmem:[%s1 + $0x5c] sm:$0xf]
        %v431 = vld [vmem:[%s1 + $0x60] sm:$0xf]
        %v432 = vld [vmem:[%s1 + $0x64] sm:$0xf]
        %v433 = vld [vmem:[%s1 + $0x68] sm:$0xf]
        %v434 = vld [vmem:[%s1 + $0x6c] sm:$0xf]
        %v435 = vld [vmem:[%s1 + $0x70] sm:$0xf]
        %v436 = vld [vmem:[%s1 + $0x74] sm:$0xf]
        %v437 = vld [vmem:[%s1 + $0x78] sm:$0xf]
        %v438 = vld [vmem:[%s1 + $0x7c] sm:$0xf]
        %v439 = vld [vmem:[%s1 + $0x80] sm:$0xf]
        %v440 = vld [vmem:[%s1 + $0x84] sm:$0xf]
        %v441 = vld [vmem:[%s1 + $0x88] sm:$0xf]
        %v442 = vld [vmem:[%s1 + $0x8c] sm:$0xf]
        %v443 = vld [vmem:[%s1 + $0x90] sm:$0xf]
        %v444 = vld [vmem:[%s1 + $0x94] sm:$0xf]
        %v445 = vld [vmem:[%s1 + $0x98] sm:$0xf]
        %v446 = vld [vmem:[%s1 + $0x9c] sm:$0xf]
        %v447 = vld [vmem:[%s1 + $0xa0] sm:$0xf]
        %v448 = vld [vmem:[%s1 + $0xa4] sm:$0xf]
        %v449 = vld [vmem:[%s1 + $0xa8] sm:$0xf]
        %v450 = vld [vmem:[%s1 + $0xac] sm:$0xf]
        %v451 = vld [vmem:[%s1 + $0xb0] sm:$0xf]
        %v452 = vld [vmem:[%s1 + $0xb4] sm:$0xf]
        %v453 = vld [vmem:[%s1 + $0xb8] sm:$0xf]
        %v454 = vld [vmem:[%s1 + $0xbc] sm:$0xf]
        %v455 = vld [vmem:[%s1 + $0xc0] sm:$0xf]
        %v456 = vld [vmem:[%s1 + $0xc4] sm:$0xf]
        %v457 = vld [vmem:[%s1 + $0xc8] sm:$0xf]
        %v458 = vld [vmem:[%s1 + $0xcc] sm:$0xf]
        %v459 = vld [vmem:[%s1 + $0xd0] sm:$0xf]
        %v460 = vld [vmem:[%s1 + $0xd4] sm:$0xf]
        %v461 = vld [vmem:[%s1 + $0xd8] sm:$0xf]
        %v462 = vld [vmem:[%s1 + $0xdc] sm:$0xf]
        %v463 = vld [vmem:[%s1 + $0xe0] sm:$0xf]
        %v464 = vld [vmem:[%s1 + $0xe4] sm:$0xf]
        %v465 = vld [vmem:[%s1 + $0xe8] sm:$0xf]
        %v466 = vld [vmem:[%s1 + $0xec] sm:$0xf]
        %v467 = vld [vmem:[%s1 + $0xf0] sm:$0xf]
        %v468 = vld [vmem:[%s1 + $0xf4] sm:$0xf]
        %v469 = vld [vmem:[%s1 + $0xf8] sm:$0xf]
        %v470 = vld [vmem:[%s1 + $0xfc] sm:$0xf]
        %v471 = vld [vmem:[%s2] sm:$0xff]
        %v472 = vld [vmem:[%s2 + $0x8] sm:$0xff]
        %v473 = vld [vmem:[%s2 + $0x10] sm:$0xff]
        %v474 = vld [vmem:[%s2 + $0x18] sm:$0xff]
        %v475 = vld [vmem:[%s2 + $0x20] sm:$0xff]
        %v476 = vld [vmem:[%s2 + $0x28] sm:$0xff]
        %v477 = vld [vmem:[%s2 + $0x30] sm:$0xff]
        %v478 = vld [vmem:[%s2 + $0x38] sm:$0xff]
        %v479 = vld [vmem:[%s2 + $0x40] sm:$0xff]
        %v480 = vld [vmem:[%s2 + $0x48] sm:$0xff]
        %v481 = vld [vmem:[%s2 + $0x50] sm:$0xff]
        %v482 = vld [vmem:[%s2 + $0x58] sm:$0xff]
        %v483 = vld [vmem:[%s2 + $0x60] sm:$0xff]
        %v484 = vld [vmem:[%s2 + $0x68] sm:$0xff]
        %v485 = vld [vmem:[%s2 + $0x70] sm:$0xff]
        %v486 = vld [vmem:[%s2 + $0x78] sm:$0xff]
        %v487 = vld [vmem:[%s2 + $0x80] sm:$0xff]
        %v488 = vld [vmem:[%s2 + $0x88] sm:$0xff]
        %v489 = vld [vmem:[%s2 + $0x90] sm:$0xff]
        %v490 = vld [vmem:[%s2 + $0x98] sm:$0xff]
        %v491 = vld [vmem:[%s2 + $0xa0] sm:$0xff]
        %v492 = vld [vmem:[%s2 + $0xa8] sm:$0xff]
        %v493 = vld [vmem:[%s2 + $0xb0] sm:$0xff]
        %v494 = vld [vmem:[%s2 + $0xb8] sm:$0xff]
        %v495 = vld [vmem:[%s2 + $0xc0] sm:$0xff]
        %v496 = vld [vmem:[%s2 + $0xc8] sm:$0xff]
        %v497 = vld [vmem:[%s2 + $0xd0] sm:$0xff]
        %v498 = vld [vmem:[%s2 + $0xd8] sm:$0xff]
        %v499 = vld [vmem:[%s2 + $0xe0] sm:$0xff]
        %v500 = vld [vmem:[%s2 + $0xe8] sm:$0xff]
        %v501 = vld [vmem:[%s2 + $0xf0] sm:$0xff]
        %v502 = vld [vmem:[%s2 + $0xf8] sm:$0xff]
        %v503 = vld [vmem:[%s2 + $0x100] sm:$0xff]
        %v504 = vld [vmem:[%s2 + $0x108] sm:$0xff]
        %v505 = vld [vmem:[%s2 + $0x110] sm:$0xff]
        %v506 = vld [vmem:[%s2 + $0x118] sm:$0xff]
        %v507 = vld [vmem:[%s2 + $0x120] sm:$0xff]
        %v508 = vld [vmem:[%s2 + $0x128] sm:$0xff]
        %v509 = vld [vmem:[%s2 + $0x130] sm:$0xff]
        %v510 = vld [vmem:[%s2 + $0x138] sm:$0xff]
        %v511 = vld [vmem:[%s2 + $0x140] sm:$0xff]
        %v512 = vld [vmem:[%s2 + $0x148] sm:$0xff]
        %v513 = vld [vmem:[%s2 + $0x150] sm:$0xff]
        %v514 = vld [vmem:[%s2 + $0x158] sm:$0xff]
        %v515 = vld [vmem:[%s2 + $0x160] sm:$0xff]
        %v516 = vld [vmem:[%s2 + $0x168] sm:$0xff]
        %v517 = vld [vmem:[%s2 + $0x170] sm:$0xff]
        %v518 = vld [vmem:[%s2 + $0x178] sm:$0xff]
        %v519 = vld [vmem:[%s2 + $0x180] sm:$0xff]
        %v520 = vld [vmem:[%s2 + $0x188] sm:$0xff]
        %v521 = vld [vmem:[%s2 + $0x190] sm:$0xff]
        %v522 = vld [vmem:[%s2 + $0x198] sm:$0xff]
        %v523 = vld [vmem:[%s2 + $0x1a0] sm:$0xff]
        %v524 = vld [vmem:[%s2 + $0x1a8] sm:$0xff]
        %v525 = vld [vmem:[%s2 + $0x1b0] sm:$0xff]
        %v526 = vld [vmem:[%s2 + $0x1b8] sm:$0xff]
        %v527 = vld [vmem:[%s2 + $0x1c0] sm:$0xff]
        %v528 = vld [vmem:[%s2 + $0x1c8] sm:$0xff]
        %v529 = vld [vmem:[%s2 + $0x1d0] sm:$0xff]
        %v530 = vld [vmem:[%s2 + $0x1d8] sm:$0xff]
        %v531 = vld [vmem:[%s2 + $0x1e0] sm:$0xff]
        %v532 = vld [vmem:[%s2 + $0x1e8] sm:$0xff]
        %v533 = vld [vmem:[%s2 + $0x1f0] sm:$0xff]
        %v534 = vld [vmem:[%s2 + $0x1f8] sm:$0xff]
        loop: start=0, step=1, limit=2
        $region79: #{tpu_custom_call.1} parent=69 // loop_pre_header
          _
        $region80: #{tpu_custom_call.1} parent=69 // loop_header
          %s536 = sphi 0, %s540
          %p537 = scmp.ge.s32.totalorder %s536, 2
        $region81: #{tpu_custom_call.1} parent=69 // loop_header_branch
          %539 = sbr.rel (%p537) target = $region85
        $region82: #{tpu_custom_call.1} parent=69 // loop_body
          %s541 = smul.addr %s536, 2
          %s542 = scalar_lea.vmem %s252, %s541 [#allocation3]
          %v543 = vld [vmem:[%s542] sm:$0x3]
          %545 = vset.pattern.permute.xlu0 0
          %546 = vperm.xlu0 %545, %v471
          %v547 = vpop.permute.xlu0 %546
          %550 = vset.pattern.permute.xlu0 0
          %551 = vperm.xlu0 %550, %v472
          %v552 = vpop.permute.xlu0 %551
          %555 = vset.pattern.permute.xlu0 0
          %556 = vperm.xlu0 %555, %v473
          %v557 = vpop.permute.xlu0 %556
          %560 = vset.pattern.permute.xlu0 0
          %561 = vperm.xlu0 %560, %v474
          %v562 = vpop.permute.xlu0 %561
          %565 = vset.pattern.permute.xlu0 0
          %566 = vperm.xlu0 %565, %v475
          %v567 = vpop.permute.xlu0 %566
          %570 = vset.pattern.permute.xlu0 0
          %571 = vperm.xlu0 %570, %v476
          %v572 = vpop.permute.xlu0 %571
          %575 = vset.pattern.permute.xlu0 0
          %576 = vperm.xlu0 %575, %v477
          %v577 = vpop.permute.xlu0 %576
          %580 = vset.pattern.permute.xlu0 0
          %581 = vperm.xlu0 %580, %v478
          %v582 = vpop.permute.xlu0 %581
          %585 = vset.pattern.permute.xlu0 0
          %586 = vperm.xlu0 %585, %v479
          %v587 = vpop.permute.xlu0 %586
          %590 = vset.pattern.permute.xlu0 0
          %591 = vperm.xlu0 %590, %v480
          %v592 = vpop.permute.xlu0 %591
          %595 = vset.pattern.permute.xlu0 0
          %596 = vperm.xlu0 %595, %v481
          %v597 = vpop.permute.xlu0 %596
          %600 = vset.pattern.permute.xlu0 0
          %601 = vperm.xlu0 %600, %v482
          %v602 = vpop.permute.xlu0 %601
          %605 = vset.pattern.permute.xlu0 0
          %606 = vperm.xlu0 %605, %v483
          %v607 = vpop.permute.xlu0 %606
          %610 = vset.pattern.permute.xlu0 0
          %611 = vperm.xlu0 %610, %v484
          %v612 = vpop.permute.xlu0 %611
          %615 = vset.pattern.permute.xlu0 0
          %616 = vperm.xlu0 %615, %v485
          %v617 = vpop.permute.xlu0 %616
          %620 = vset.pattern.permute.xlu0 0
          %621 = vperm.xlu0 %620, %v486
          %v622 = vpop.permute.xlu0 %621
          %625 = vset.pattern.permute.xlu0 0
          %626 = vperm.xlu0 %625, %v487
          %v627 = vpop.permute.xlu0 %626
          %630 = vset.pattern.permute.xlu0 0
          %631 = vperm.xlu0 %630, %v488
          %v632 = vpop.permute.xlu0 %631
          %635 = vset.pattern.permute.xlu0 0
          %636 = vperm.xlu0 %635, %v489
          %v637 = vpop.permute.xlu0 %636
          %640 = vset.pattern.permute.xlu0 0
          %641 = vperm.xlu0 %640, %v490
          %v642 = vpop.permute.xlu0 %641
          %645 = vset.pattern.permute.xlu0 0
          %646 = vperm.xlu0 %645, %v491
          %v647 = vpop.permute.xlu0 %646
          %650 = vset.pattern.permute.xlu0 0
          %651 = vperm.xlu0 %650, %v492
          %v652 = vpop.permute.xlu0 %651
          %655 = vset.pattern.permute.xlu0 0
          %656 = vperm.xlu0 %655, %v493
          %v657 = vpop.permute.xlu0 %656
          %660 = vset.pattern.permute.xlu0 0
          %661 = vperm.xlu0 %660, %v494
          %v662 = vpop.permute.xlu0 %661
          %665 = vset.pattern.permute.xlu0 0
          %666 = vperm.xlu0 %665, %v495
          %v667 = vpop.permute.xlu0 %666
          %670 = vset.pattern.permute.xlu0 0
          %671 = vperm.xlu0 %670, %v496
          %v672 = vpop.permute.xlu0 %671
          %675 = vset.pattern.permute.xlu0 0
          %676 = vperm.xlu0 %675, %v497
          %v677 = vpop.permute.xlu0 %676
          %680 = vset.pattern.permute.xlu0 0
          %681 = vperm.xlu0 %680, %v498
          %v682 = vpop.permute.xlu0 %681
          %685 = vset.pattern.permute.xlu0 0
          %686 = vperm.xlu0 %685, %v499
          %v687 = vpop.permute.xlu0 %686
          %690 = vset.pattern.permute.xlu0 0
          %691 = vperm.xlu0 %690, %v500
          %v692 = vpop.permute.xlu0 %691
          %695 = vset.pattern.permute.xlu0 0
          %696 = vperm.xlu0 %695, %v501
          %v697 = vpop.permute.xlu0 %696
          %700 = vset.pattern.permute.xlu0 0
          %701 = vperm.xlu0 %700, %v502
          %v702 = vpop.permute.xlu0 %701
          %705 = vset.pattern.permute.xlu0 0
          %706 = vperm.xlu0 %705, %v503
          %v707 = vpop.permute.xlu0 %706
          %710 = vset.pattern.permute.xlu0 0
          %711 = vperm.xlu0 %710, %v504
          %v712 = vpop.permute.xlu0 %711
          %715 = vset.pattern.permute.xlu0 0
          %716 = vperm.xlu0 %715, %v505
          %v717 = vpop.permute.xlu0 %716
          %720 = vset.pattern.permute.xlu0 0
          %721 = vperm.xlu0 %720, %v506
          %v722 = vpop.permute.xlu0 %721
          %725 = vset.pattern.permute.xlu0 0
          %726 = vperm.xlu0 %725, %v507
          %v727 = vpop.permute.xlu0 %726
          %730 = vset.pattern.permute.xlu0 0
          %731 = vperm.xlu0 %730, %v508
          %v732 = vpop.permute.xlu0 %731
          %735 = vset.pattern.permute.xlu0 0
          %736 = vperm.xlu0 %735, %v509
          %v737 = vpop.permute.xlu0 %736
          %740 = vset.pattern.permute.xlu0 0
          %741 = vperm.xlu0 %740, %v510
          %v742 = vpop.permute.xlu0 %741
          %745 = vset.pattern.permute.xlu0 0
          %746 = vperm.xlu0 %745, %v511
          %v747 = vpop.permute.xlu0 %746
          %750 = vset.pattern.permute.xlu0 0
          %751 = vperm.xlu0 %750, %v512
          %v752 = vpop.permute.xlu0 %751
          %755 = vset.pattern.permute.xlu0 0
          %756 = vperm.xlu0 %755, %v513
          %v757 = vpop.permute.xlu0 %756
          %760 = vset.pattern.permute.xlu0 0
          %761 = vperm.xlu0 %760, %v514
          %v762 = vpop.permute.xlu0 %761
          %765 = vset.pattern.permute.xlu0 0
          %766 = vperm.xlu0 %765, %v515
          %v767 = vpop.permute.xlu0 %766
          %770 = vset.pattern.permute.xlu0 0
          %771 = vperm.xlu0 %770, %v516
          %v772 = vpop.permute.xlu0 %771
          %775 = vset.pattern.permute.xlu0 0
          %776 = vperm.xlu0 %775, %v517
          %v777 = vpop.permute.xlu0 %776
          %780 = vset.pattern.permute.xlu0 0
          %781 = vperm.xlu0 %780, %v518
          %v782 = vpop.permute.xlu0 %781
          %785 = vset.pattern.permute.xlu0 0
          %786 = vperm.xlu0 %785, %v519
          %v787 = vpop.permute.xlu0 %786
          %790 = vset.pattern.permute.xlu0 0
          %791 = vperm.xlu0 %790, %v520
          %v792 = vpop.permute.xlu0 %791
          %795 = vset.pattern.permute.xlu0 0
          %796 = vperm.xlu0 %795, %v521
          %v797 = vpop.permute.xlu0 %796
          %800 = vset.pattern.permute.xlu0 0
          %801 = vperm.xlu0 %800, %v522
          %v802 = vpop.permute.xlu0 %801
          %805 = vset.pattern.permute.xlu0 0
          %806 = vperm.xlu0 %805, %v523
          %v807 = vpop.permute.xlu0 %806
          %810 = vset.pattern.permute.xlu0 0
          %811 = vperm.xlu0 %810, %v524
          %v812 = vpop.permute.xlu0 %811
          %815 = vset.pattern.permute.xlu0 0
          %816 = vperm.xlu0 %815, %v525
          %v817 = vpop.permute.xlu0 %816
          %820 = vset.pattern.permute.xlu0 0
          %821 = vperm.xlu0 %820, %v526
          %v822 = vpop.permute.xlu0 %821
          %825 = vset.pattern.permute.xlu0 0
          %826 = vperm.xlu0 %825, %v527
          %v827 = vpop.permute.xlu0 %826
          %830 = vset.pattern.permute.xlu0 0
          %831 = vperm.xlu0 %830, %v528
          %v832 = vpop.permute.xlu0 %831
          %835 = vset.pattern.permute.xlu0 0
          %836 = vperm.xlu0 %835, %v529
          %v837 = vpop.permute.xlu0 %836
          %840 = vset.pattern.permute.xlu0 0
          %841 = vperm.xlu0 %840, %v530
          %v842 = vpop.permute.xlu0 %841
          %845 = vset.pattern.permute.xlu0 0
          %846 = vperm.xlu0 %845, %v531
          %v847 = vpop.permute.xlu0 %846
          %850 = vset.pattern.permute.xlu0 0
          %851 = vperm.xlu0 %850, %v532
          %v852 = vpop.permute.xlu0 %851
          %855 = vset.pattern.permute.xlu0 0
          %856 = vperm.xlu0 %855, %v533
          %v857 = vpop.permute.xlu0 %856
          %860 = vset.pattern.permute.xlu0 0
          %861 = vperm.xlu0 %860, %v534
          %v862 = vpop.permute.xlu0 %861
          %v928 = vunpack.c.l.b16 %v407
          %v929 = vunpack.c.l.b16 %v408
          %v930 = vunpack.c.l.b16 %v409
          %v931 = vunpack.c.l.b16 %v410
          %v932 = vunpack.c.l.b16 %v411
          %v933 = vunpack.c.l.b16 %v412
          %v934 = vunpack.c.l.b16 %v413
          %v935 = vunpack.c.l.b16 %v414
          %v936 = vunpack.c.l.b16 %v415
          %v937 = vunpack.c.l.b16 %v416
          %v938 = vunpack.c.l.b16 %v417
          %v939 = vunpack.c.l.b16 %v418
          %v940 = vunpack.c.l.b16 %v419
          %v941 = vunpack.c.l.b16 %v420
          %v942 = vunpack.c.l.b16 %v421
          %v943 = vunpack.c.l.b16 %v422
          %v944 = vunpack.c.l.b16 %v423
          %v945 = vunpack.c.l.b16 %v424
          %v946 = vunpack.c.l.b16 %v425
          %v947 = vunpack.c.l.b16 %v426
          %v948 = vunpack.c.l.b16 %v427
          %v949 = vunpack.c.l.b16 %v428
          %v950 = vunpack.c.l.b16 %v429
          %v951 = vunpack.c.l.b16 %v430
          %v952 = vunpack.c.l.b16 %v431
          %v953 = vunpack.c.l.b16 %v432
          %v954 = vunpack.c.l.b16 %v433
          %v955 = vunpack.c.l.b16 %v434
          %v956 = vunpack.c.l.b16 %v435
          %v957 = vunpack.c.l.b16 %v436
          %v958 = vunpack.c.l.b16 %v437
          %v959 = vunpack.c.l.b16 %v438
          %v960 = vunpack.c.l.b16 %v439
          %v961 = vunpack.c.l.b16 %v440
          %v962 = vunpack.c.l.b16 %v441
          %v963 = vunpack.c.l.b16 %v442
          %v964 = vunpack.c.l.b16 %v443
          %v965 = vunpack.c.l.b16 %v444
          %v966 = vunpack.c.l.b16 %v445
          %v967 = vunpack.c.l.b16 %v446
          %v968 = vunpack.c.l.b16 %v447
          %v969 = vunpack.c.l.b16 %v448
          %v970 = vunpack.c.l.b16 %v449
          %v971 = vunpack.c.l.b16 %v450
          %v972 = vunpack.c.l.b16 %v451
          %v973 = vunpack.c.l.b16 %v452
          %v974 = vunpack.c.l.b16 %v453
          %v975 = vunpack.c.l.b16 %v454
          %v976 = vunpack.c.l.b16 %v455
          %v977 = vunpack.c.l.b16 %v456
          %v978 = vunpack.c.l.b16 %v457
          %v979 = vunpack.c.l.b16 %v458
          %v980 = vunpack.c.l.b16 %v459
          %v981 = vunpack.c.l.b16 %v460
          %v982 = vunpack.c.l.b16 %v461
          %v983 = vunpack.c.l.b16 %v462
          %v984 = vunpack.c.l.b16 %v463
          %v985 = vunpack.c.l.b16 %v464
          %v986 = vunpack.c.l.b16 %v465
          %v987 = vunpack.c.l.b16 %v466
          %v988 = vunpack.c.l.b16 %v467
          %v989 = vunpack.c.l.b16 %v468
          %v990 = vunpack.c.l.b16 %v469
          %v991 = vunpack.c.l.b16 %v470
          %v992 = vpack.c.b16 %v929, %v928
          %v993 = vpack.c.b16 %v931, %v930
          %v994 = vpack.c.b16 %v933, %v932
          %v995 = vpack.c.b16 %v935, %v934
          %v996 = vpack.c.b16 %v937, %v936
          %v997 = vpack.c.b16 %v939, %v938
          %v998 = vpack.c.b16 %v941, %v940
          %v999 = vpack.c.b16 %v943, %v942
          %v1000 = vpack.c.b16 %v945, %v944
          %v1001 = vpack.c.b16 %v947, %v946
          %v1002 = vpack.c.b16 %v949, %v948
          %v1003 = vpack.c.b16 %v951, %v950
          %v1004 = vpack.c.b16 %v953, %v952
          %v1005 = vpack.c.b16 %v955, %v954
          %v1006 = vpack.c.b16 %v957, %v956
          %v1007 = vpack.c.b16 %v959, %v958
          %v1008 = vpack.c.b16 %v961, %v960
          %v1009 = vpack.c.b16 %v963, %v962
          %v1010 = vpack.c.b16 %v965, %v964
          %v1011 = vpack.c.b16 %v967, %v966
          %v1012 = vpack.c.b16 %v969, %v968
          %v1013 = vpack.c.b16 %v971, %v970
          %v1014 = vpack.c.b16 %v973, %v972
          %v1015 = vpack.c.b16 %v975, %v974
          %v1016 = vpack.c.b16 %v977, %v976
          %v1017 = vpack.c.b16 %v979, %v978
          %v1018 = vpack.c.b16 %v981, %v980
          %v1019 = vpack.c.b16 %v983, %v982
          %v1020 = vpack.c.b16 %v985, %v984
          %v1021 = vpack.c.b16 %v987, %v986
          %v1022 = vpack.c.b16 %v989, %v988
          %v1023 = vpack.c.b16 %v991, %v990
          %vm1024 = vcmask 31744
          %v1026 = vsel %vm1024, %v992, 0
          %v1029 = vsel %vm1024, %v993, 0
          %v1032 = vsel %vm1024, %v994, 0
          %v1035 = vsel %vm1024, %v995, 0
          %v1038 = vsel %vm1024, %v996, 0
          %v1041 = vsel %vm1024, %v997, 0
          %v1044 = vsel %vm1024, %v998, 0
          %v1047 = vsel %vm1024, %v999, 0
          %v1050 = vsel %vm1024, %v1000, 0
          %v1053 = vsel %vm1024, %v1001, 0
          %v1056 = vsel %vm1024, %v1002, 0
          %v1059 = vsel %vm1024, %v1003, 0
          %v1062 = vsel %vm1024, %v1004, 0
          %v1065 = vsel %vm1024, %v1005, 0
          %v1068 = vsel %vm1024, %v1006, 0
          %v1071 = vsel %vm1024, %v1007, 0
          %v1074 = vsel %vm1024, %v1008, 0
          %v1077 = vsel %vm1024, %v1009, 0
          %v1080 = vsel %vm1024, %v1010, 0
          %v1083 = vsel %vm1024, %v1011, 0
          %v1086 = vsel %vm1024, %v1012, 0
          %v1089 = vsel %vm1024, %v1013, 0
          %v1092 = vsel %vm1024, %v1014, 0
          %v1095 = vsel %vm1024, %v1015, 0
          %v1098 = vsel %vm1024, %v1016, 0
          %v1101 = vsel %vm1024, %v1017, 0
          %v1104 = vsel %vm1024, %v1018, 0
          %v1107 = vsel %vm1024, %v1019, 0
          %v1110 = vsel %vm1024, %v1020, 0
          %v1113 = vsel %vm1024, %v1021, 0
          %v1116 = vsel %vm1024, %v1022, 0
          %v1119 = vsel %vm1024, %v1023, 0
          %vm1121 = vcmask 1041408
          %v1123 = vsel %vm1121, %v543, 0
          %1125 = vmatprep.subr.bf16.mxu0 0
          %1126 = vmatpush1.bf16.msra.mxu0 0
          %1127 = vmatprep.subr.bf16.mxu0 0
          %1128 = vmatpush1.bf16.msra.mxu0 0
          %1129 = vmatprep.subr.bf16.mxu0 0
          %1130 = vmatpush1.bf16.msra.mxu0 0
          %1131 = vmatprep.subr.bf16.mxu0 0
          %1132 = vmatpush1.bf16.msra.mxu0 0
          %1133 = vmatprep.subr.bf16.mxu0 0
          %1134 = vmatpush1.bf16.msra.mxu0 0
          %1135 = vmatprep.subr.bf16.mxu0 0
          %1136 = vmatpush1.bf16.msra.mxu0 0
          %1137 = vmatprep.subr.bf16.mxu0 0
          %1138 = vmatpush1.bf16.msra.mxu0 0
          %1139 = vmatprep.subr.bf16.mxu0 0
          %1140 = vmatpush1.bf16.msra.mxu0 %v1123
          %1141 = vmatprep.subr.bf16.mxu0 0
          %1142 = vmatpush2.bf16.msra.mxu0 0
          %1143 = vmatprep.subr.bf16.mxu0 0
          %1144 = vmatpush2.bf16.msra.mxu0 0
          %1145 = vmatprep.subr.bf16.mxu0 0
          %1146 = vmatpush2.bf16.msra.mxu0 0
          %1147 = vmatprep.subr.bf16.mxu0 0
          %1148 = vmatpush2.bf16.msra.mxu0 0
          %1149 = vmatprep.subr.bf16.mxu0 0
          %1150 = vmatpush2.bf16.msra.mxu0 0
          %1151 = vmatprep.subr.bf16.mxu0 0
          %1152 = vmatpush2.bf16.msra.mxu0 0
          %1153 = vmatprep.subr.bf16.mxu0 0
          %1154 = vmatpush2.bf16.msra.mxu0 0
          %1155 = vmatprep.subr.bf16.mxu0 0
          %1156 = vmatpush2.bf16.msra.mxu0 0
          %1157 = vmatprep.mubr.bf16.mxu0 0
          %1158 = vmatmul.mubr.bf16.gmra.mxu0 %v1026
          %v1159 = vpop.f32.mrf.mxu0
          %v1160 = vadd.f32 %v547, %v1159
          %v1161 = vpop.f32.mrf.mxu0
          %v1162 = vpop.f32.mrf.mxu0
          %v1163 = vadd.f32 %v552, %v1162
          %v1164 = vpop.f32.mrf.mxu0
          %1165 = vmatprep.mubr.bf16.mxu0 0
          %1166 = vmatmul.mubr.bf16.gmra.mxu0 %v1029
          %v1167 = vpop.f32.mrf.mxu0
          %v1168 = vadd.f32 %v557, %v1167
          %v1169 = vpop.f32.mrf.mxu0
          %v1170 = vpop.f32.mrf.mxu0
          %v1171 = vadd.f32 %v562, %v1170
          %v1172 = vpop.f32.mrf.mxu0
          %1173 = vmatprep.mubr.bf16.mxu0 0
          %1174 = vmatmul.mubr.bf16.gmra.mxu0 %v1032
          %v1175 = vpop.f32.mrf.mxu0
          %v1176 = vadd.f32 %v567, %v1175
          %v1177 = vpop.f32.mrf.mxu0
          %v1178 = vpop.f32.mrf.mxu0
          %v1179 = vadd.f32 %v572, %v1178
          %v1180 = vpop.f32.mrf.mxu0
          %1181 = vmatprep.mubr.bf16.mxu0 0
          %1182 = vmatmul.mubr.bf16.gmra.mxu0 %v1035
          %v1183 = vpop.f32.mrf.mxu0
          %v1184 = vadd.f32 %v577, %v1183
          %v1185 = vpop.f32.mrf.mxu0
          %v1186 = vpop.f32.mrf.mxu0
          %v1187 = vadd.f32 %v582, %v1186
          %v1188 = vpop.f32.mrf.mxu0
          %1189 = vmatprep.mubr.bf16.mxu0 0
          %1190 = vmatmul.mubr.bf16.gmra.mxu0 %v1038
          %v1191 = vpop.f32.mrf.mxu0
          %v1192 = vadd.f32 %v587, %v1191
          %v1193 = vpop.f32.mrf.mxu0
          %v1194 = vpop.f32.mrf.mxu0
          %v1195 = vadd.f32 %v592, %v1194
          %v1196 = vpop.f32.mrf.mxu0
          %1197 = vmatprep.mubr.bf16.mxu0 0
          %1198 = vmatmul.mubr.bf16.gmra.mxu0 %v1041
          %v1199 = vpop.f32.mrf.mxu0
          %v1200 = vadd.f32 %v597, %v1199
          %v1201 = vpop.f32.mrf.mxu0
          %v1202 = vpop.f32.mrf.mxu0
          %v1203 = vadd.f32 %v602, %v1202
          %v1204 = vpop.f32.mrf.mxu0
          %1205 = vmatprep.mubr.bf16.mxu0 0
          %1206 = vmatmul.mubr.bf16.gmra.mxu0 %v1044
          %v1207 = vpop.f32.mrf.mxu0
          %v1208 = vadd.f32 %v607, %v1207
          %v1209 = vpop.f32.mrf.mxu0
          %v1210 = vpop.f32.mrf.mxu0
          %v1211 = vadd.f32 %v612, %v1210
          %v1212 = vpop.f32.mrf.mxu0
          %1213 = vmatprep.mubr.bf16.mxu0 0
          %1214 = vmatmul.mubr.bf16.gmra.mxu0 %v1047
          %v1215 = vpop.f32.mrf.mxu0
          %v1216 = vadd.f32 %v617, %v1215
          %v1217 = vpop.f32.mrf.mxu0
          %v1218 = vpop.f32.mrf.mxu0
          %v1219 = vadd.f32 %v622, %v1218
          %v1220 = vpop.f32.mrf.mxu0
          %1221 = vmatprep.mubr.bf16.mxu0 0
          %1222 = vmatmul.mubr.bf16.gmra.mxu0 %v1050
          %v1223 = vpop.f32.mrf.mxu0
          %v1224 = vadd.f32 %v627, %v1223
          %v1225 = vpop.f32.mrf.mxu0
          %v1226 = vpop.f32.mrf.mxu0
          %v1227 = vadd.f32 %v632, %v1226
          %v1228 = vpop.f32.mrf.mxu0
          %1229 = vmatprep.mubr.bf16.mxu0 0
          %1230 = vmatmul.mubr.bf16.gmra.mxu0 %v1053
          %v1231 = vpop.f32.mrf.mxu0
          %v1232 = vadd.f32 %v637, %v1231
          %v1233 = vpop.f32.mrf.mxu0
          %v1234 = vpop.f32.mrf.mxu0
          %v1235 = vadd.f32 %v642, %v1234
          %v1236 = vpop.f32.mrf.mxu0
          %1237 = vmatprep.mubr.bf16.mxu0 0
          %1238 = vmatmul.mubr.bf16.gmra.mxu0 %v1056
          %v1239 = vpop.f32.mrf.mxu0
          %v1240 = vadd.f32 %v647, %v1239
          %v1241 = vpop.f32.mrf.mxu0
          %v1242 = vpop.f32.mrf.mxu0
          %v1243 = vadd.f32 %v652, %v1242
          %v1244 = vpop.f32.mrf.mxu0
          %1245 = vmatprep.mubr.bf16.mxu0 0
          %1246 = vmatmul.mubr.bf16.gmra.mxu0 %v1059
          %v1247 = vpop.f32.mrf.mxu0
          %v1248 = vadd.f32 %v657, %v1247
          %v1249 = vpop.f32.mrf.mxu0
          %v1250 = vpop.f32.mrf.mxu0
          %v1251 = vadd.f32 %v662, %v1250
          %v1252 = vpop.f32.mrf.mxu0
          %1253 = vmatprep.mubr.bf16.mxu0 0
          %1254 = vmatmul.mubr.bf16.gmra.mxu0 %v1062
          %v1255 = vpop.f32.mrf.mxu0
          %v1256 = vadd.f32 %v667, %v1255
          %v1257 = vpop.f32.mrf.mxu0
          %v1258 = vpop.f32.mrf.mxu0
          %v1259 = vadd.f32 %v672, %v1258
          %v1260 = vpop.f32.mrf.mxu0
          %1261 = vmatprep.mubr.bf16.mxu0 0
          %1262 = vmatmul.mubr.bf16.gmra.mxu0 %v1065
          %v1263 = vpop.f32.mrf.mxu0
          %v1264 = vadd.f32 %v677, %v1263
          %v1265 = vpop.f32.mrf.mxu0
          %v1266 = vpop.f32.mrf.mxu0
          %v1267 = vadd.f32 %v682, %v1266
          %v1268 = vpop.f32.mrf.mxu0
          %1269 = vmatprep.mubr.bf16.mxu0 0
          %1270 = vmatmul.mubr.bf16.gmra.mxu0 %v1068
          %v1271 = vpop.f32.mrf.mxu0
          %v1272 = vadd.f32 %v687, %v1271
          %v1273 = vpop.f32.mrf.mxu0
          %v1274 = vpop.f32.mrf.mxu0
          %v1275 = vadd.f32 %v692, %v1274
          %v1276 = vpop.f32.mrf.mxu0
          %1277 = vmatprep.mubr.bf16.mxu0 0
          %1278 = vmatmul.mubr.bf16.gmra.mxu0 %v1071
          %v1279 = vpop.f32.mrf.mxu0
          %v1280 = vadd.f32 %v697, %v1279
          %v1281 = vpop.f32.mrf.mxu0
          %v1282 = vpop.f32.mrf.mxu0
          %v1283 = vadd.f32 %v702, %v1282
          %v1284 = vpop.f32.mrf.mxu0
          %1285 = vmatprep.mubr.bf16.mxu0 0
          %1286 = vmatmul.mubr.bf16.gmra.mxu0 %v1074
          %v1287 = vpop.f32.mrf.mxu0
          %v1288 = vadd.f32 %v707, %v1287
          %v1289 = vpop.f32.mrf.mxu0
          %v1290 = vpop.f32.mrf.mxu0
          %v1291 = vadd.f32 %v712, %v1290
          %v1292 = vpop.f32.mrf.mxu0
          %1293 = vmatprep.mubr.bf16.mxu0 0
          %1294 = vmatmul.mubr.bf16.gmra.mxu0 %v1077
          %v1295 = vpop.f32.mrf.mxu0
          %v1296 = vadd.f32 %v717, %v1295
          %v1297 = vpop.f32.mrf.mxu0
          %v1298 = vpop.f32.mrf.mxu0
          %v1299 = vadd.f32 %v722, %v1298
          %v1300 = vpop.f32.mrf.mxu0
          %1301 = vmatprep.mubr.bf16.mxu0 0
          %1302 = vmatmul.mubr.bf16.gmra.mxu0 %v1080
          %v1303 = vpop.f32.mrf.mxu0
          %v1304 = vadd.f32 %v727, %v1303
          %v1305 = vpop.f32.mrf.mxu0
          %v1306 = vpop.f32.mrf.mxu0
          %v1307 = vadd.f32 %v732, %v1306
          %v1308 = vpop.f32.mrf.mxu0
          %1309 = vmatprep.mubr.bf16.mxu0 0
          %1310 = vmatmul.mubr.bf16.gmra.mxu0 %v1083
          %v1311 = vpop.f32.mrf.mxu0
          %v1312 = vadd.f32 %v737, %v1311
          %v1313 = vpop.f32.mrf.mxu0
          %v1314 = vpop.f32.mrf.mxu0
          %v1315 = vadd.f32 %v742, %v1314
          %v1316 = vpop.f32.mrf.mxu0
          %1317 = vmatprep.mubr.bf16.mxu0 0
          %1318 = vmatmul.mubr.bf16.gmra.mxu0 %v1086
          %v1319 = vpop.f32.mrf.mxu0
          %v1320 = vadd.f32 %v747, %v1319
          %v1321 = vpop.f32.mrf.mxu0
          %v1322 = vpop.f32.mrf.mxu0
          %v1323 = vadd.f32 %v752, %v1322
          %v1324 = vpop.f32.mrf.mxu0
          %1325 = vmatprep.mubr.bf16.mxu0 0
          %1326 = vmatmul.mubr.bf16.gmra.mxu0 %v1089
          %v1327 = vpop.f32.mrf.mxu0
          %v1328 = vadd.f32 %v757, %v1327
          %v1329 = vpop.f32.mrf.mxu0
          %v1330 = vpop.f32.mrf.mxu0
          %v1331 = vadd.f32 %v762, %v1330
          %v1332 = vpop.f32.mrf.mxu0
          %1333 = vmatprep.mubr.bf16.mxu0 0
          %1334 = vmatmul.mubr.bf16.gmra.mxu0 %v1092
          %v1335 = vpop.f32.mrf.mxu0
          %v1336 = vadd.f32 %v767, %v1335
          %v1337 = vpop.f32.mrf.mxu0
          %v1338 = vpop.f32.mrf.mxu0
          %v1339 = vadd.f32 %v772, %v1338
          %v1340 = vpop.f32.mrf.mxu0
          %1341 = vmatprep.mubr.bf16.mxu0 0
          %1342 = vmatmul.mubr.bf16.gmra.mxu0 %v1095
          %v1343 = vpop.f32.mrf.mxu0
          %v1344 = vadd.f32 %v777, %v1343
          %v1345 = vpop.f32.mrf.mxu0
          %v1346 = vpop.f32.mrf.mxu0
          %v1347 = vadd.f32 %v782, %v1346
          %v1348 = vpop.f32.mrf.mxu0
          %1349 = vmatprep.mubr.bf16.mxu0 0
          %1350 = vmatmul.mubr.bf16.gmra.mxu0 %v1098
          %v1351 = vpop.f32.mrf.mxu0
          %v1352 = vadd.f32 %v787, %v1351
          %v1353 = vpop.f32.mrf.mxu0
          %v1354 = vpop.f32.mrf.mxu0
          %v1355 = vadd.f32 %v792, %v1354
          %v1356 = vpop.f32.mrf.mxu0
          %1357 = vmatprep.mubr.bf16.mxu0 0
          %1358 = vmatmul.mubr.bf16.gmra.mxu0 %v1101
          %v1359 = vpop.f32.mrf.mxu0
          %v1360 = vadd.f32 %v797, %v1359
          %v1361 = vpop.f32.mrf.mxu0
          %v1362 = vpop.f32.mrf.mxu0
          %v1363 = vadd.f32 %v802, %v1362
          %v1364 = vpop.f32.mrf.mxu0
          %1365 = vmatprep.mubr.bf16.mxu0 0
          %1366 = vmatmul.mubr.bf16.gmra.mxu0 %v1104
          %v1367 = vpop.f32.mrf.mxu0
          %v1368 = vadd.f32 %v807, %v1367
          %v1369 = vpop.f32.mrf.mxu0
          %v1370 = vpop.f32.mrf.mxu0
          %v1371 = vadd.f32 %v812, %v1370
          %v1372 = vpop.f32.mrf.mxu0
          %1373 = vmatprep.mubr.bf16.mxu0 0
          %1374 = vmatmul.mubr.bf16.gmra.mxu0 %v1107
          %v1375 = vpop.f32.mrf.mxu0
          %v1376 = vadd.f32 %v817, %v1375
          %v1377 = vpop.f32.mrf.mxu0
          %v1378 = vpop.f32.mrf.mxu0
          %v1379 = vadd.f32 %v822, %v1378
          %v1380 = vpop.f32.mrf.mxu0
          %1381 = vmatprep.mubr.bf16.mxu0 0
          %1382 = vmatmul.mubr.bf16.gmra.mxu0 %v1110
          %v1383 = vpop.f32.mrf.mxu0
          %v1384 = vadd.f32 %v827, %v1383
          %v1385 = vpop.f32.mrf.mxu0
          %v1386 = vpop.f32.mrf.mxu0
          %v1387 = vadd.f32 %v832, %v1386
          %v1388 = vpop.f32.mrf.mxu0
          %1389 = vmatprep.mubr.bf16.mxu0 0
          %1390 = vmatmul.mubr.bf16.gmra.mxu0 %v1113
          %v1391 = vpop.f32.mrf.mxu0
          %v1392 = vadd.f32 %v837, %v1391
          %v1393 = vpop.f32.mrf.mxu0
          %v1394 = vpop.f32.mrf.mxu0
          %v1395 = vadd.f32 %v842, %v1394
          %v1396 = vpop.f32.mrf.mxu0
          %1397 = vmatprep.mubr.bf16.mxu0 0
          %1398 = vmatmul.mubr.bf16.gmra.mxu0 %v1116
          %v1399 = vpop.f32.mrf.mxu0
          %v1400 = vadd.f32 %v847, %v1399
          %v1401 = vpop.f32.mrf.mxu0
          %v1402 = vpop.f32.mrf.mxu0
          %v1403 = vadd.f32 %v852, %v1402
          %v1404 = vpop.f32.mrf.mxu0
          %1405 = vmatprep.mubr.bf16.mxu0 0
          %1406 = vmatmul.mubr.bf16.gmra.mxu0 %v1119
          %v1407 = vpop.f32.mrf.mxu0
          %v1408 = vadd.f32 %v857, %v1407
          %v1409 = vpop.f32.mrf.mxu0
          %v1410 = vpop.f32.mrf.mxu0
          %v1411 = vadd.f32 %v862, %v1410
          %v1412 = vpop.f32.mrf.mxu0
          %1413 = vdwg.mxu0
          %v1414 = vmax.f32 %v1160, 0.0
          %v1415 = vmax.f32 %v1163, 0.0
          %v1416 = vmax.f32 %v1168, 0.0
          %v1417 = vmax.f32 %v1171, 0.0
          %v1418 = vmax.f32 %v1176, 0.0
          %v1419 = vmax.f32 %v1179, 0.0
          %v1420 = vmax.f32 %v1184, 0.0
          %v1421 = vmax.f32 %v1187, 0.0
          %v1422 = vmax.f32 %v1192, 0.0
          %v1423 = vmax.f32 %v1195, 0.0
          %v1424 = vmax.f32 %v1200, 0.0
          %v1425 = vmax.f32 %v1203, 0.0
          %v1426 = vmax.f32 %v1208, 0.0
          %v1427 = vmax.f32 %v1211, 0.0
          %v1428 = vmax.f32 %v1216, 0.0
          %v1429 = vmax.f32 %v1219, 0.0
          %v1430 = vmax.f32 %v1224, 0.0
          %v1431 = vmax.f32 %v1227, 0.0
          %v1432 = vmax.f32 %v1232, 0.0
          %v1433 = vmax.f32 %v1235, 0.0
          %v1434 = vmax.f32 %v1240, 0.0
          %v1435 = vmax.f32 %v1243, 0.0
          %v1436 = vmax.f32 %v1248, 0.0
          %v1437 = vmax.f32 %v1251, 0.0
          %v1438 = vmax.f32 %v1256, 0.0
          %v1439 = vmax.f32 %v1259, 0.0
          %v1440 = vmax.f32 %v1264, 0.0
          %v1441 = vmax.f32 %v1267, 0.0
          %v1442 = vmax.f32 %v1272, 0.0
          %v1443 = vmax.f32 %v1275, 0.0
          %v1444 = vmax.f32 %v1280, 0.0
          %v1445 = vmax.f32 %v1283, 0.0
          %v1446 = vmax.f32 %v1288, 0.0
          %v1447 = vmax.f32 %v1291, 0.0
          %v1448 = vmax.f32 %v1296, 0.0
          %v1449 = vmax.f32 %v1299, 0.0
          %v1450 = vmax.f32 %v1304, 0.0
          %v1451 = vmax.f32 %v1307, 0.0
          %v1452 = vmax.f32 %v1312, 0.0
          %v1453 = vmax.f32 %v1315, 0.0
          %v1454 = vmax.f32 %v1320, 0.0
          %v1455 = vmax.f32 %v1323, 0.0
          %v1456 = vmax.f32 %v1328, 0.0
          %v1457 = vmax.f32 %v1331, 0.0
          %v1458 = vmax.f32 %v1336, 0.0
          %v1459 = vmax.f32 %v1339, 0.0
          %v1460 = vmax.f32 %v1344, 0.0
          %v1461 = vmax.f32 %v1347, 0.0
          %v1462 = vmax.f32 %v1352, 0.0
          %v1463 = vmax.f32 %v1355, 0.0
          %v1464 = vmax.f32 %v1360, 0.0
          %v1465 = vmax.f32 %v1363, 0.0
          %v1466 = vmax.f32 %v1368, 0.0
          %v1467 = vmax.f32 %v1371, 0.0
          %v1468 = vmax.f32 %v1376, 0.0
          %v1469 = vmax.f32 %v1379, 0.0
          %v1470 = vmax.f32 %v1384, 0.0
          %v1471 = vmax.f32 %v1387, 0.0
          %v1472 = vmax.f32 %v1392, 0.0
          %v1473 = vmax.f32 %v1395, 0.0
          %v1474 = vmax.f32 %v1400, 0.0
          %v1475 = vmax.f32 %v1403, 0.0
          %v1476 = vmax.f32 %v1408, 0.0
          %v1477 = vmax.f32 %v1411, 0.0
          %s1478 = smul.u32 %s536, 512
          %s1479 = scalar_lea.vmem [#allocation2], %s1478
          %v1480 = vld [vmem:[%s1479] sm:$0xff]
          %v1481 = vld [vmem:[%s1479 + $0x8] sm:$0xff]
          %v1482 = vld [vmem:[%s1479 + $0x10] sm:$0xff]
          %v1483 = vld [vmem:[%s1479 + $0x18] sm:$0xff]
          %v1484 = vld [vmem:[%s1479 + $0x20] sm:$0xff]
          %v1485 = vld [vmem:[%s1479 + $0x28] sm:$0xff]
          %v1486 = vld [vmem:[%s1479 + $0x30] sm:$0xff]
          %v1487 = vld [vmem:[%s1479 + $0x38] sm:$0xff]
          %v1488 = vld [vmem:[%s1479 + $0x40] sm:$0xff]
          %v1489 = vld [vmem:[%s1479 + $0x48] sm:$0xff]
          %v1490 = vld [vmem:[%s1479 + $0x50] sm:$0xff]
          %v1491 = vld [vmem:[%s1479 + $0x58] sm:$0xff]
          %v1492 = vld [vmem:[%s1479 + $0x60] sm:$0xff]
          %v1493 = vld [vmem:[%s1479 + $0x68] sm:$0xff]
          %v1494 = vld [vmem:[%s1479 + $0x70] sm:$0xff]
          %v1495 = vld [vmem:[%s1479 + $0x78] sm:$0xff]
          %v1496 = vld [vmem:[%s1479 + $0x80] sm:$0xff]
          %v1497 = vld [vmem:[%s1479 + $0x88] sm:$0xff]
          %v1498 = vld [vmem:[%s1479 + $0x90] sm:$0xff]
          %v1499 = vld [vmem:[%s1479 + $0x98] sm:$0xff]
          %v1500 = vld [vmem:[%s1479 + $0xa0] sm:$0xff]
          %v1501 = vld [vmem:[%s1479 + $0xa8] sm:$0xff]
          %v1502 = vld [vmem:[%s1479 + $0xb0] sm:$0xff]
          %v1503 = vld [vmem:[%s1479 + $0xb8] sm:$0xff]
          %v1504 = vld [vmem:[%s1479 + $0xc0] sm:$0xff]
          %v1505 = vld [vmem:[%s1479 + $0xc8] sm:$0xff]
          %v1506 = vld [vmem:[%s1479 + $0xd0] sm:$0xff]
          %v1507 = vld [vmem:[%s1479 + $0xd8] sm:$0xff]
          %v1508 = vld [vmem:[%s1479 + $0xe0] sm:$0xff]
          %v1509 = vld [vmem:[%s1479 + $0xe8] sm:$0xff]
          %v1510 = vld [vmem:[%s1479 + $0xf0] sm:$0xff]
          %v1511 = vld [vmem:[%s1479 + $0xf8] sm:$0xff]
          %v1512 = vld [vmem:[%s1479 + $0x100] sm:$0xff]
          %v1513 = vld [vmem:[%s1479 + $0x108] sm:$0xff]
          %v1514 = vld [vmem:[%s1479 + $0x110] sm:$0xff]
          %v1515 = vld [vmem:[%s1479 + $0x118] sm:$0xff]
          %v1516 = vld [vmem:[%s1479 + $0x120] sm:$0xff]
          %v1517 = vld [vmem:[%s1479 + $0x128] sm:$0xff]
          %v1518 = vld [vmem:[%s1479 + $0x130] sm:$0xff]
          %v1519 = vld [vmem:[%s1479 + $0x138] sm:$0xff]
          %v1520 = vld [vmem:[%s1479 + $0x140] sm:$0xff]
          %v1521 = vld [vmem:[%s1479 + $0x148] sm:$0xff]
          %v1522 = vld [vmem:[%s1479 + $0x150] sm:$0xff]
          %v1523 = vld [vmem:[%s1479 + $0x158] sm:$0xff]
          %v1524 = vld [vmem:[%s1479 + $0x160] sm:$0xff]
          %v1525 = vld [vmem:[%s1479 + $0x168] sm:$0xff]
          %v1526 = vld [vmem:[%s1479 + $0x170] sm:$0xff]
          %v1527 = vld [vmem:[%s1479 + $0x178] sm:$0xff]
          %v1528 = vld [vmem:[%s1479 + $0x180] sm:$0xff]
          %v1529 = vld [vmem:[%s1479 + $0x188] sm:$0xff]
          %v1530 = vld [vmem:[%s1479 + $0x190] sm:$0xff]
          %v1531 = vld [vmem:[%s1479 + $0x198] sm:$0xff]
          %v1532 = vld [vmem:[%s1479 + $0x1a0] sm:$0xff]
          %v1533 = vld [vmem:[%s1479 + $0x1a8] sm:$0xff]
          %v1534 = vld [vmem:[%s1479 + $0x1b0] sm:$0xff]
          %v1535 = vld [vmem:[%s1479 + $0x1b8] sm:$0xff]
          %v1536 = vld [vmem:[%s1479 + $0x1c0] sm:$0xff]
          %v1537 = vld [vmem:[%s1479 + $0x1c8] sm:$0xff]
          %v1538 = vld [vmem:[%s1479 + $0x1d0] sm:$0xff]
          %v1539 = vld [vmem:[%s1479 + $0x1d8] sm:$0xff]
          %v1540 = vld [vmem:[%s1479 + $0x1e0] sm:$0xff]
          %v1541 = vld [vmem:[%s1479 + $0x1e8] sm:$0xff]
          %v1542 = vld [vmem:[%s1479 + $0x1f0] sm:$0xff]
          %v1543 = vld [vmem:[%s1479 + $0x1f8] sm:$0xff]
          %1544 = vadd.xlane.f32.xlu0 %v1414
          %v1545 = vpop.xlane.xlu0 %1544
          %1546 = vadd.xlane.f32.xlu0 %v1415
          %v1547 = vpop.xlane.xlu0 %1546
          %1548 = vadd.xlane.f32.xlu0 %v1416
          %v1549 = vpop.xlane.xlu0 %1548
          %1550 = vadd.xlane.f32.xlu0 %v1417
          %v1551 = vpop.xlane.xlu0 %1550
          %1552 = vadd.xlane.f32.xlu0 %v1418
          %v1553 = vpop.xlane.xlu0 %1552
          %1554 = vadd.xlane.f32.xlu0 %v1419
          %v1555 = vpop.xlane.xlu0 %1554
          %1556 = vadd.xlane.f32.xlu0 %v1420
          %v1557 = vpop.xlane.xlu0 %1556
          %1558 = vadd.xlane.f32.xlu0 %v1421
          %v1559 = vpop.xlane.xlu0 %1558
          %1560 = vadd.xlane.f32.xlu0 %v1422
          %v1561 = vpop.xlane.xlu0 %1560
          %1562 = vadd.xlane.f32.xlu0 %v1423
          %v1563 = vpop.xlane.xlu0 %1562
          %1564 = vadd.xlane.f32.xlu0 %v1424
          %v1565 = vpop.xlane.xlu0 %1564
          %1566 = vadd.xlane.f32.xlu0 %v1425
          %v1567 = vpop.xlane.xlu0 %1566
          %1568 = vadd.xlane.f32.xlu0 %v1426
          %v1569 = vpop.xlane.xlu0 %1568
          %1570 = vadd.xlane.f32.xlu0 %v1427
          %v1571 = vpop.xlane.xlu0 %1570
          %1572 = vadd.xlane.f32.xlu0 %v1428
          %v1573 = vpop.xlane.xlu0 %1572
          %1574 = vadd.xlane.f32.xlu0 %v1429
          %v1575 = vpop.xlane.xlu0 %1574
          %1576 = vadd.xlane.f32.xlu0 %v1430
          %v1577 = vpop.xlane.xlu0 %1576
          %1578 = vadd.xlane.f32.xlu0 %v1431
          %v1579 = vpop.xlane.xlu0 %1578
          %1580 = vadd.xlane.f32.xlu0 %v1432
          %v1581 = vpop.xlane.xlu0 %1580
          %1582 = vadd.xlane.f32.xlu0 %v1433
          %v1583 = vpop.xlane.xlu0 %1582
          %1584 = vadd.xlane.f32.xlu0 %v1434
          %v1585 = vpop.xlane.xlu0 %1584
          %1586 = vadd.xlane.f32.xlu0 %v1435
          %v1587 = vpop.xlane.xlu0 %1586
          %1588 = vadd.xlane.f32.xlu0 %v1436
          %v1589 = vpop.xlane.xlu0 %1588
          %1590 = vadd.xlane.f32.xlu0 %v1437
          %v1591 = vpop.xlane.xlu0 %1590
          %1592 = vadd.xlane.f32.xlu0 %v1438
          %v1593 = vpop.xlane.xlu0 %1592
          %1594 = vadd.xlane.f32.xlu0 %v1439
          %v1595 = vpop.xlane.xlu0 %1594
          %1596 = vadd.xlane.f32.xlu0 %v1440
          %v1597 = vpop.xlane.xlu0 %1596
          %1598 = vadd.xlane.f32.xlu0 %v1441
          %v1599 = vpop.xlane.xlu0 %1598
          %1600 = vadd.xlane.f32.xlu0 %v1442
          %v1601 = vpop.xlane.xlu0 %1600
          %1602 = vadd.xlane.f32.xlu0 %v1443
          %v1603 = vpop.xlane.xlu0 %1602
          %1604 = vadd.xlane.f32.xlu0 %v1444
          %v1605 = vpop.xlane.xlu0 %1604
          %1606 = vadd.xlane.f32.xlu0 %v1445
          %v1607 = vpop.xlane.xlu0 %1606
          %1608 = vadd.xlane.f32.xlu0 %v1446
          %v1609 = vpop.xlane.xlu0 %1608
          %1610 = vadd.xlane.f32.xlu0 %v1447
          %v1611 = vpop.xlane.xlu0 %1610
          %1612 = vadd.xlane.f32.xlu0 %v1448
          %v1613 = vpop.xlane.xlu0 %1612
          %1614 = vadd.xlane.f32.xlu0 %v1449
          %v1615 = vpop.xlane.xlu0 %1614
          %1616 = vadd.xlane.f32.xlu0 %v1450
          %v1617 = vpop.xlane.xlu0 %1616
          %1618 = vadd.xlane.f32.xlu0 %v1451
          %v1619 = vpop.xlane.xlu0 %1618
          %1620 = vadd.xlane.f32.xlu0 %v1452
          %v1621 = vpop.xlane.xlu0 %1620
          %1622 = vadd.xlane.f32.xlu0 %v1453
          %v1623 = vpop.xlane.xlu0 %1622
          %1624 = vadd.xlane.f32.xlu0 %v1454
          %v1625 = vpop.xlane.xlu0 %1624
          %1626 = vadd.xlane.f32.xlu0 %v1455
          %v1627 = vpop.xlane.xlu0 %1626
          %1628 = vadd.xlane.f32.xlu0 %v1456
          %v1629 = vpop.xlane.xlu0 %1628
          %1630 = vadd.xlane.f32.xlu0 %v1457
          %v1631 = vpop.xlane.xlu0 %1630
          %1632 = vadd.xlane.f32.xlu0 %v1458
          %v1633 = vpop.xlane.xlu0 %1632
          %1634 = vadd.xlane.f32.xlu0 %v1459
          %v1635 = vpop.xlane.xlu0 %1634
          %1636 = vadd.xlane.f32.xlu0 %v1460
          %v1637 = vpop.xlane.xlu0 %1636
          %1638 = vadd.xlane.f32.xlu0 %v1461
          %v1639 = vpop.xlane.xlu0 %1638
          %1640 = vadd.xlane.f32.xlu0 %v1462
          %v1641 = vpop.xlane.xlu0 %1640
          %1642 = vadd.xlane.f32.xlu0 %v1463
          %v1643 = vpop.xlane.xlu0 %1642
          %1644 = vadd.xlane.f32.xlu0 %v1464
          %v1645 = vpop.xlane.xlu0 %1644
          %1646 = vadd.xlane.f32.xlu0 %v1465
          %v1647 = vpop.xlane.xlu0 %1646
          %1648 = vadd.xlane.f32.xlu0 %v1466
          %v1649 = vpop.xlane.xlu0 %1648
          %1650 = vadd.xlane.f32.xlu0 %v1467
          %v1651 = vpop.xlane.xlu0 %1650
          %1652 = vadd.xlane.f32.xlu0 %v1468
          %v1653 = vpop.xlane.xlu0 %1652
          %1654 = vadd.xlane.f32.xlu0 %v1469
          %v1655 = vpop.xlane.xlu0 %1654
          %1656 = vadd.xlane.f32.xlu0 %v1470
          %v1657 = vpop.xlane.xlu0 %1656
          %1658 = vadd.xlane.f32.xlu0 %v1471
          %v1659 = vpop.xlane.xlu0 %1658
          %1660 = vadd.xlane.f32.xlu0 %v1472
          %v1661 = vpop.xlane.xlu0 %1660
          %1662 = vadd.xlane.f32.xlu0 %v1473
          %v1663 = vpop.xlane.xlu0 %1662
          %1664 = vadd.xlane.f32.xlu0 %v1474
          %v1665 = vpop.xlane.xlu0 %1664
          %1666 = vadd.xlane.f32.xlu0 %v1475
          %v1667 = vpop.xlane.xlu0 %1666
          %1668 = vadd.xlane.f32.xlu0 %v1476
          %v1669 = vpop.xlane.xlu0 %1668
          %1670 = vadd.xlane.f32.xlu0 %v1477
          %v1671 = vpop.xlane.xlu0 %1670
          %v1672 = vadd.f32 %v1480, %v1545
          %v1673 = vadd.f32 %v1481, %v1547
          %v1674 = vadd.f32 %v1482, %v1549
          %v1675 = vadd.f32 %v1483, %v1551
          %v1676 = vadd.f32 %v1484, %v1553
          %v1677 = vadd.f32 %v1485, %v1555
          %v1678 = vadd.f32 %v1486, %v1557
          %v1679 = vadd.f32 %v1487, %v1559
          %v1680 = vadd.f32 %v1488, %v1561
          %v1681 = vadd.f32 %v1489, %v1563
          %v1682 = vadd.f32 %v1490, %v1565
          %v1683 = vadd.f32 %v1491, %v1567
          %v1684 = vadd.f32 %v1492, %v1569
          %v1685 = vadd.f32 %v1493, %v1571
          %v1686 = vadd.f32 %v1494, %v1573
          %v1687 = vadd.f32 %v1495, %v1575
          %v1688 = vadd.f32 %v1496, %v1577
          %v1689 = vadd.f32 %v1497, %v1579
          %v1690 = vadd.f32 %v1498, %v1581
          %v1691 = vadd.f32 %v1499, %v1583
          %v1692 = vadd.f32 %v1500, %v1585
          %v1693 = vadd.f32 %v1501, %v1587
          %v1694 = vadd.f32 %v1502, %v1589
          %v1695 = vadd.f32 %v1503, %v1591
          %v1696 = vadd.f32 %v1504, %v1593
          %v1697 = vadd.f32 %v1505, %v1595
          %v1698 = vadd.f32 %v1506, %v1597
          %v1699 = vadd.f32 %v1507, %v1599
          %v1700 = vadd.f32 %v1508, %v1601
          %v1701 = vadd.f32 %v1509, %v1603
          %v1702 = vadd.f32 %v1510, %v1605
          %v1703 = vadd.f32 %v1511, %v1607
          %v1704 = vadd.f32 %v1512, %v1609
          %v1705 = vadd.f32 %v1513, %v1611
          %v1706 = vadd.f32 %v1514, %v1613
          %v1707 = vadd.f32 %v1515, %v1615
          %v1708 = vadd.f32 %v1516, %v1617
          %v1709 = vadd.f32 %v1517, %v1619
          %v1710 = vadd.f32 %v1518, %v1621
          %v1711 = vadd.f32 %v1519, %v1623
          %v1712 = vadd.f32 %v1520, %v1625
          %v1713 = vadd.f32 %v1521, %v1627
          %v1714 = vadd.f32 %v1522, %v1629
          %v1715 = vadd.f32 %v1523, %v1631
          %v1716 = vadd.f32 %v1524, %v1633
          %v1717 = vadd.f32 %v1525, %v1635
          %v1718 = vadd.f32 %v1526, %v1637
          %v1719 = vadd.f32 %v1527, %v1639
          %v1720 = vadd.f32 %v1528, %v1641
          %v1721 = vadd.f32 %v1529, %v1643
          %v1722 = vadd.f32 %v1530, %v1645
          %v1723 = vadd.f32 %v1531, %v1647
          %v1724 = vadd.f32 %v1532, %v1649
          %v1725 = vadd.f32 %v1533, %v1651
          %v1726 = vadd.f32 %v1534, %v1653
          %v1727 = vadd.f32 %v1535, %v1655
          %v1728 = vadd.f32 %v1536, %v1657
          %v1729 = vadd.f32 %v1537, %v1659
          %v1730 = vadd.f32 %v1538, %v1661
          %v1731 = vadd.f32 %v1539, %v1663
          %v1732 = vadd.f32 %v1540, %v1665
          %v1733 = vadd.f32 %v1541, %v1667
          %v1734 = vadd.f32 %v1542, %v1669
          %v1735 = vadd.f32 %v1543, %v1671
          %vm1736 = vcmask 7168
          %1737 = vst.msk [vmem:[%s1479] sm:$0xff] %vm1736, %v1672
          %1738 = vst.msk [vmem:[%s1479 + $0x8] sm:$0xff] %vm1736, %v1673
          %1739 = vst.msk [vmem:[%s1479 + $0x10] sm:$0xff] %vm1736, %v1674
          %1740 = vst.msk [vmem:[%s1479 + $0x18] sm:$0xff] %vm1736, %v1675
          %1741 = vst.msk [vmem:[%s1479 + $0x20] sm:$0xff] %vm1736, %v1676
          %1742 = vst.msk [vmem:[%s1479 + $0x28] sm:$0xff] %vm1736, %v1677
          %1743 = vst.msk [vmem:[%s1479 + $0x30] sm:$0xff] %vm1736, %v1678
          %1744 = vst.msk [vmem:[%s1479 + $0x38] sm:$0xff] %vm1736, %v1679
          %1745 = vst.msk [vmem:[%s1479 + $0x40] sm:$0xff] %vm1736, %v1680
          %1746 = vst.msk [vmem:[%s1479 + $0x48] sm:$0xff] %vm1736, %v1681
          %1747 = vst.msk [vmem:[%s1479 + $0x50] sm:$0xff] %vm1736, %v1682
          %1748 = vst.msk [vmem:[%s1479 + $0x58] sm:$0xff] %vm1736, %v1683
          %1749 = vst.msk [vmem:[%s1479 + $0x60] sm:$0xff] %vm1736, %v1684
          %1750 = vst.msk [vmem:[%s1479 + $0x68] sm:$0xff] %vm1736, %v1685
          %1751 = vst.msk [vmem:[%s1479 + $0x70] sm:$0xff] %vm1736, %v1686
          %1752 = vst.msk [vmem:[%s1479 + $0x78] sm:$0xff] %vm1736, %v1687
          %1753 = vst.msk [vmem:[%s1479 + $0x80] sm:$0xff] %vm1736, %v1688
          %1754 = vst.msk [vmem:[%s1479 + $0x88] sm:$0xff] %vm1736, %v1689
          %1755 = vst.msk [vmem:[%s1479 + $0x90] sm:$0xff] %vm1736, %v1690
          %1756 = vst.msk [vmem:[%s1479 + $0x98] sm:$0xff] %vm1736, %v1691
          %1757 = vst.msk [vmem:[%s1479 + $0xa0] sm:$0xff] %vm1736, %v1692
          %1758 = vst.msk [vmem:[%s1479 + $0xa8] sm:$0xff] %vm1736, %v1693
          %1759 = vst.msk [vmem:[%s1479 + $0xb0] sm:$0xff] %vm1736, %v1694
          %1760 = vst.msk [vmem:[%s1479 + $0xb8] sm:$0xff] %vm1736, %v1695
          %1761 = vst.msk [vmem:[%s1479 + $0xc0] sm:$0xff] %vm1736, %v1696
          %1762 = vst.msk [vmem:[%s1479 + $0xc8] sm:$0xff] %vm1736, %v1697
          %1763 = vst.msk [vmem:[%s1479 + $0xd0] sm:$0xff] %vm1736, %v1698
          %1764 = vst.msk [vmem:[%s1479 + $0xd8] sm:$0xff] %vm1736, %v1699
          %1765 = vst.msk [vmem:[%s1479 + $0xe0] sm:$0xff] %vm1736, %v1700
          %1766 = vst.msk [vmem:[%s1479 + $0xe8] sm:$0xff] %vm1736, %v1701
          %1767 = vst.msk [vmem:[%s1479 + $0xf0] sm:$0xff] %vm1736, %v1702
          %1768 = vst.msk [vmem:[%s1479 + $0xf8] sm:$0xff] %vm1736, %v1703
          %1769 = vst.msk [vmem:[%s1479 + $0x100] sm:$0xff] %vm1736, %v1704
          %1770 = vst.msk [vmem:[%s1479 + $0x108] sm:$0xff] %vm1736, %v1705
          %1771 = vst.msk [vmem:[%s1479 + $0x110] sm:$0xff] %vm1736, %v1706
          %1772 = vst.msk [vmem:[%s1479 + $0x118] sm:$0xff] %vm1736, %v1707
          %1773 = vst.msk [vmem:[%s1479 + $0x120] sm:$0xff] %vm1736, %v1708
          %1774 = vst.msk [vmem:[%s1479 + $0x128] sm:$0xff] %vm1736, %v1709
          %1775 = vst.msk [vmem:[%s1479 + $0x130] sm:$0xff] %vm1736, %v1710
          %1776 = vst.msk [vmem:[%s1479 + $0x138] sm:$0xff] %vm1736, %v1711
          %1777 = vst.msk [vmem:[%s1479 + $0x140] sm:$0xff] %vm1736, %v1712
          %1778 = vst.msk [vmem:[%s1479 + $0x148] sm:$0xff] %vm1736, %v1713
          %1779 = vst.msk [vmem:[%s1479 + $0x150] sm:$0xff] %vm1736, %v1714
          %1780 = vst.msk [vmem:[%s1479 + $0x158] sm:$0xff] %vm1736, %v1715
          %1781 = vst.msk [vmem:[%s1479 + $0x160] sm:$0xff] %vm1736, %v1716
          %1782 = vst.msk [vmem:[%s1479 + $0x168] sm:$0xff] %vm1736, %v1717
          %1783 = vst.msk [vmem:[%s1479 + $0x170] sm:$0xff] %vm1736, %v1718
          %1784 = vst.msk [vmem:[%s1479 + $0x178] sm:$0xff] %vm1736, %v1719
          %1785 = vst.msk [vmem:[%s1479 + $0x180] sm:$0xff] %vm1736, %v1720
          %1786 = vst.msk [vmem:[%s1479 + $0x188] sm:$0xff] %vm1736, %v1721
          %1787 = vst.msk [vmem:[%s1479 + $0x190] sm:$0xff] %vm1736, %v1722
          %1788 = vst.msk [vmem:[%s1479 + $0x198] sm:$0xff] %vm1736, %v1723
          %1789 = vst.msk [vmem:[%s1479 + $0x1a0] sm:$0xff] %vm1736, %v1724
          %1790 = vst.msk [vmem:[%s1479 + $0x1a8] sm:$0xff] %vm1736, %v1725
          %1791 = vst.msk [vmem:[%s1479 + $0x1b0] sm:$0xff] %vm1736, %v1726
          %1792 = vst.msk [vmem:[%s1479 + $0x1b8] sm:$0xff] %vm1736, %v1727
          %1793 = vst.msk [vmem:[%s1479 + $0x1c0] sm:$0xff] %vm1736, %v1728
          %1794 = vst.msk [vmem:[%s1479 + $0x1c8] sm:$0xff] %vm1736, %v1729
          %1795 = vst.msk [vmem:[%s1479 + $0x1d0] sm:$0xff] %vm1736, %v1730
          %1796 = vst.msk [vmem:[%s1479 + $0x1d8] sm:$0xff] %vm1736, %v1731
          %1797 = vst.msk [vmem:[%s1479 + $0x1e0] sm:$0xff] %vm1736, %v1732
          %1798 = vst.msk [vmem:[%s1479 + $0x1e8] sm:$0xff] %vm1736, %v1733
          %1799 = vst.msk [vmem:[%s1479 + $0x1f0] sm:$0xff] %vm1736, %v1734
          %1800 = vst.msk [vmem:[%s1479 + $0x1f8] sm:$0xff] %vm1736, %v1735
        $region83: #{tpu_custom_call.1} parent=69 // loop_footer
          %s540 = sadd.s32 1, %s536
        $region84: #{tpu_custom_call.1} parent=69 // loop_footer_branch
          %535 = sbr.rel target = $region80
        $region85: #{tpu_custom_call.1} parent=69 // loop_exit
          _
        %p1801 = scmp.eq.s32.totalorder %s22, 1
        // Predicated region
        $region86: #{tpu_custom_call.1} parent=69 // pred_check
          %p1802 = pneg %p1801
        $region87: #{tpu_custom_call.1} parent=69 // pred_check_branch
          %1804 = sbr.rel (%p1802) target = $region89
        $region88: #{tpu_custom_call.1} parent=69 // pred_region
          %v1805 = vld [vmem:[%s3] sm:$0xff]
          %v1806 = vld [vmem:[%s3 + $0x8] sm:$0xff]
          %v1807 = vld [vmem:[%s3 + $0x10] sm:$0xff]
          %v1808 = vld [vmem:[%s3 + $0x18] sm:$0xff]
          %v1809 = vld [vmem:[%s3 + $0x20] sm:$0xff]
          %v1810 = vld [vmem:[%s3 + $0x28] sm:$0xff]
          %v1811 = vld [vmem:[%s3 + $0x30] sm:$0xff]
          %v1812 = vld [vmem:[%s3 + $0x38] sm:$0xff]
          %v1813 = vld [vmem:[%s3 + $0x40] sm:$0xff]
          %v1814 = vld [vmem:[%s3 + $0x48] sm:$0xff]
          %v1815 = vld [vmem:[%s3 + $0x50] sm:$0xff]
          %v1816 = vld [vmem:[%s3 + $0x58] sm:$0xff]
          %v1817 = vld [vmem:[%s3 + $0x60] sm:$0xff]
          %v1818 = vld [vmem:[%s3 + $0x68] sm:$0xff]
          %v1819 = vld [vmem:[%s3 + $0x70] sm:$0xff]
          %v1820 = vld [vmem:[%s3 + $0x78] sm:$0xff]
          %v1821 = vld [vmem:[%s3 + $0x80] sm:$0xff]
          %v1822 = vld [vmem:[%s3 + $0x88] sm:$0xff]
          %v1823 = vld [vmem:[%s3 + $0x90] sm:$0xff]
          %v1824 = vld [vmem:[%s3 + $0x98] sm:$0xff]
          %v1825 = vld [vmem:[%s3 + $0xa0] sm:$0xff]
          %v1826 = vld [vmem:[%s3 + $0xa8] sm:$0xff]
          %v1827 = vld [vmem:[%s3 + $0xb0] sm:$0xff]
          %v1828 = vld [vmem:[%s3 + $0xb8] sm:$0xff]
          %v1829 = vld [vmem:[%s3 + $0xc0] sm:$0xff]
          %v1830 = vld [vmem:[%s3 + $0xc8] sm:$0xff]
          %v1831 = vld [vmem:[%s3 + $0xd0] sm:$0xff]
          %v1832 = vld [vmem:[%s3 + $0xd8] sm:$0xff]
          %v1833 = vld [vmem:[%s3 + $0xe0] sm:$0xff]
          %v1834 = vld [vmem:[%s3 + $0xe8] sm:$0xff]
          %v1835 = vld [vmem:[%s3 + $0xf0] sm:$0xff]
          %v1836 = vld [vmem:[%s3 + $0xf8] sm:$0xff]
          %v1837 = vld [vmem:[%s3 + $0x100] sm:$0xff]
          %v1838 = vld [vmem:[%s3 + $0x108] sm:$0xff]
          %v1839 = vld [vmem:[%s3 + $0x110] sm:$0xff]
          %v1840 = vld [vmem:[%s3 + $0x118] sm:$0xff]
          %v1841 = vld [vmem:[%s3 + $0x120] sm:$0xff]
          %v1842 = vld [vmem:[%s3 + $0x128] sm:$0xff]
          %v1843 = vld [vmem:[%s3 + $0x130] sm:$0xff]
          %v1844 = vld [vmem:[%s3 + $0x138] sm:$0xff]
          %v1845 = vld [vmem:[%s3 + $0x140] sm:$0xff]
          %v1846 = vld [vmem:[%s3 + $0x148] sm:$0xff]
          %v1847 = vld [vmem:[%s3 + $0x150] sm:$0xff]
          %v1848 = vld [vmem:[%s3 + $0x158] sm:$0xff]
          %v1849 = vld [vmem:[%s3 + $0x160] sm:$0xff]
          %v1850 = vld [vmem:[%s3 + $0x168] sm:$0xff]
          %v1851 = vld [vmem:[%s3 + $0x170] sm:$0xff]
          %v1852 = vld [vmem:[%s3 + $0x178] sm:$0xff]
          %v1853 = vld [vmem:[%s3 + $0x180] sm:$0xff]
          %v1854 = vld [vmem:[%s3 + $0x188] sm:$0xff]
          %v1855 = vld [vmem:[%s3 + $0x190] sm:$0xff]
          %v1856 = vld [vmem:[%s3 + $0x198] sm:$0xff]
          %v1857 = vld [vmem:[%s3 + $0x1a0] sm:$0xff]
          %v1858 = vld [vmem:[%s3 + $0x1a8] sm:$0xff]
          %v1859 = vld [vmem:[%s3 + $0x1b0] sm:$0xff]
          %v1860 = vld [vmem:[%s3 + $0x1b8] sm:$0xff]
          %v1861 = vld [vmem:[%s3 + $0x1c0] sm:$0xff]
          %v1862 = vld [vmem:[%s3 + $0x1c8] sm:$0xff]
          %v1863 = vld [vmem:[%s3 + $0x1d0] sm:$0xff]
          %v1864 = vld [vmem:[%s3 + $0x1d8] sm:$0xff]
          %v1865 = vld [vmem:[%s3 + $0x1e0] sm:$0xff]
          %v1866 = vld [vmem:[%s3 + $0x1e8] sm:$0xff]
          %v1867 = vld [vmem:[%s3 + $0x1f0] sm:$0xff]
          %v1868 = vld [vmem:[%s3 + $0x1f8] sm:$0xff]
          %v1869 = vld [vmem:[%s4] sm:$0x1]
          loop: start=0, step=1, limit=2
          $region90: #{tpu_custom_call.1} parent=88 // loop_pre_header
            _
          $region91: #{tpu_custom_call.1} parent=88 // loop_header
            %s1871 = sphi 0, %s1875
            %p1872 = scmp.ge.s32.totalorder %s1871, 2
          $region92: #{tpu_custom_call.1} parent=88 // loop_header_branch
            %1874 = sbr.rel (%p1872) target = $region96
          $region93: #{tpu_custom_call.1} parent=88 // loop_body
            %s1876 = smul.u32 %s1871, 512
            %s1877 = scalar_lea.vmem [#allocation2], %s1876
            %v1878 = vld [vmem:[%s1877] sm:$0xff]
            %v1879 = vld [vmem:[%s1877 + $0x8] sm:$0xff]
            %v1880 = vld [vmem:[%s1877 + $0x10] sm:$0xff]
            %v1881 = vld [vmem:[%s1877 + $0x18] sm:$0xff]
            %v1882 = vld [vmem:[%s1877 + $0x20] sm:$0xff]
            %v1883 = vld [vmem:[%s1877 + $0x28] sm:$0xff]
            %v1884 = vld [vmem:[%s1877 + $0x30] sm:$0xff]
            %v1885 = vld [vmem:[%s1877 + $0x38] sm:$0xff]
            %v1886 = vld [vmem:[%s1877 + $0x40] sm:$0xff]
            %v1887 = vld [vmem:[%s1877 + $0x48] sm:$0xff]
            %v1888 = vld [vmem:[%s1877 + $0x50] sm:$0xff]
            %v1889 = vld [vmem:[%s1877 + $0x58] sm:$0xff]
            %v1890 = vld [vmem:[%s1877 + $0x60] sm:$0xff]
            %v1891 = vld [vmem:[%s1877 + $0x68] sm:$0xff]
            %v1892 = vld [vmem:[%s1877 + $0x70] sm:$0xff]
            %v1893 = vld [vmem:[%s1877 + $0x78] sm:$0xff]
            %v1894 = vld [vmem:[%s1877 + $0x80] sm:$0xff]
            %v1895 = vld [vmem:[%s1877 + $0x88] sm:$0xff]
            %v1896 = vld [vmem:[%s1877 + $0x90] sm:$0xff]
            %v1897 = vld [vmem:[%s1877 + $0x98] sm:$0xff]
            %v1898 = vld [vmem:[%s1877 + $0xa0] sm:$0xff]
            %v1899 = vld [vmem:[%s1877 + $0xa8] sm:$0xff]
            %v1900 = vld [vmem:[%s1877 + $0xb0] sm:$0xff]
            %v1901 = vld [vmem:[%s1877 + $0xb8] sm:$0xff]
            %v1902 = vld [vmem:[%s1877 + $0xc0] sm:$0xff]
            %v1903 = vld [vmem:[%s1877 + $0xc8] sm:$0xff]
            %v1904 = vld [vmem:[%s1877 + $0xd0] sm:$0xff]
            %v1905 = vld [vmem:[%s1877 + $0xd8] sm:$0xff]
            %v1906 = vld [vmem:[%s1877 + $0xe0] sm:$0xff]
            %v1907 = vld [vmem:[%s1877 + $0xe8] sm:$0xff]
            %v1908 = vld [vmem:[%s1877 + $0xf0] sm:$0xff]
            %v1909 = vld [vmem:[%s1877 + $0xf8] sm:$0xff]
            %v1910 = vld [vmem:[%s1877 + $0x100] sm:$0xff]
            %v1911 = vld [vmem:[%s1877 + $0x108] sm:$0xff]
            %v1912 = vld [vmem:[%s1877 + $0x110] sm:$0xff]
            %v1913 = vld [vmem:[%s1877 + $0x118] sm:$0xff]
            %v1914 = vld [vmem:[%s1877 + $0x120] sm:$0xff]
            %v1915 = vld [vmem:[%s1877 + $0x128] sm:$0xff]
            %v1916 = vld [vmem:[%s1877 + $0x130] sm:$0xff]
            %v1917 = vld [vmem:[%s1877 + $0x138] sm:$0xff]
            %v1918 = vld [vmem:[%s1877 + $0x140] sm:$0xff]
            %v1919 = vld [vmem:[%s1877 + $0x148] sm:$0xff]
            %v1920 = vld [vmem:[%s1877 + $0x150] sm:$0xff]
            %v1921 = vld [vmem:[%s1877 + $0x158] sm:$0xff]
            %v1922 = vld [vmem:[%s1877 + $0x160] sm:$0xff]
            %v1923 = vld [vmem:[%s1877 + $0x168] sm:$0xff]
            %v1924 = vld [vmem:[%s1877 + $0x170] sm:$0xff]
            %v1925 = vld [vmem:[%s1877 + $0x178] sm:$0xff]
            %v1926 = vld [vmem:[%s1877 + $0x180] sm:$0xff]
            %v1927 = vld [vmem:[%s1877 + $0x188] sm:$0xff]
            %v1928 = vld [vmem:[%s1877 + $0x190] sm:$0xff]
            %v1929 = vld [vmem:[%s1877 + $0x198] sm:$0xff]
            %v1930 = vld [vmem:[%s1877 + $0x1a0] sm:$0xff]
            %v1931 = vld [vmem:[%s1877 + $0x1a8] sm:$0xff]
            %v1932 = vld [vmem:[%s1877 + $0x1b0] sm:$0xff]
            %v1933 = vld [vmem:[%s1877 + $0x1b8] sm:$0xff]
            %v1934 = vld [vmem:[%s1877 + $0x1c0] sm:$0xff]
            %v1935 = vld [vmem:[%s1877 + $0x1c8] sm:$0xff]
            %v1936 = vld [vmem:[%s1877 + $0x1d0] sm:$0xff]
            %v1937 = vld [vmem:[%s1877 + $0x1d8] sm:$0xff]
            %v1938 = vld [vmem:[%s1877 + $0x1e0] sm:$0xff]
            %v1939 = vld [vmem:[%s1877 + $0x1e8] sm:$0xff]
            %v1940 = vld [vmem:[%s1877 + $0x1f0] sm:$0xff]
            %v1941 = vld [vmem:[%s1877 + $0x1f8] sm:$0xff]
            %v1942 = vmul.f32 %v1878, 0.00390625
            %v1943 = vmul.f32 %v1879, 0.00390625
            %v1944 = vmul.f32 %v1880, 0.00390625
            %v1945 = vmul.f32 %v1881, 0.00390625
            %v1946 = vmul.f32 %v1882, 0.00390625
            %v1947 = vmul.f32 %v1883, 0.00390625
            %v1948 = vmul.f32 %v1884, 0.00390625
            %v1949 = vmul.f32 %v1885, 0.00390625
            %v1950 = vmul.f32 %v1886, 0.00390625
            %v1951 = vmul.f32 %v1887, 0.00390625
            %v1952 = vmul.f32 %v1888, 0.00390625
            %v1953 = vmul.f32 %v1889, 0.00390625
            %v1954 = vmul.f32 %v1890, 0.00390625
            %v1955 = vmul.f32 %v1891, 0.00390625
            %v1956 = vmul.f32 %v1892, 0.00390625
            %v1957 = vmul.f32 %v1893, 0.00390625
            %v1958 = vmul.f32 %v1894, 0.00390625
            %v1959 = vmul.f32 %v1895, 0.00390625
            %v1960 = vmul.f32 %v1896, 0.00390625
            %v1961 = vmul.f32 %v1897, 0.00390625
            %v1962 = vmul.f32 %v1898, 0.00390625
            %v1963 = vmul.f32 %v1899, 0.00390625
            %v1964 = vmul.f32 %v1900, 0.00390625
            %v1965 = vmul.f32 %v1901, 0.00390625
            %v1966 = vmul.f32 %v1902, 0.00390625
            %v1967 = vmul.f32 %v1903, 0.00390625
            %v1968 = vmul.f32 %v1904, 0.00390625
            %v1969 = vmul.f32 %v1905, 0.00390625
            %v1970 = vmul.f32 %v1906, 0.00390625
            %v1971 = vmul.f32 %v1907, 0.00390625
            %v1972 = vmul.f32 %v1908, 0.00390625
            %v1973 = vmul.f32 %v1909, 0.00390625
            %v1974 = vmul.f32 %v1910, 0.00390625
            %v1975 = vmul.f32 %v1911, 0.00390625
            %v1976 = vmul.f32 %v1912, 0.00390625
            %v1977 = vmul.f32 %v1913, 0.00390625
            %v1978 = vmul.f32 %v1914, 0.00390625
            %v1979 = vmul.f32 %v1915, 0.00390625
            %v1980 = vmul.f32 %v1916, 0.00390625
            %v1981 = vmul.f32 %v1917, 0.00390625
            %v1982 = vmul.f32 %v1918, 0.00390625
            %v1983 = vmul.f32 %v1919, 0.00390625
            %v1984 = vmul.f32 %v1920, 0.00390625
            %v1985 = vmul.f32 %v1921, 0.00390625
            %v1986 = vmul.f32 %v1922, 0.00390625
            %v1987 = vmul.f32 %v1923, 0.00390625
            %v1988 = vmul.f32 %v1924, 0.00390625
            %v1989 = vmul.f32 %v1925, 0.00390625
            %v1990 = vmul.f32 %v1926, 0.00390625
            %v1991 = vmul.f32 %v1927, 0.00390625
            %v1992 = vmul.f32 %v1928, 0.00390625
            %v1993 = vmul.f32 %v1929, 0.00390625
            %v1994 = vmul.f32 %v1930, 0.00390625
            %v1995 = vmul.f32 %v1931, 0.00390625
            %v1996 = vmul.f32 %v1932, 0.00390625
            %v1997 = vmul.f32 %v1933, 0.00390625
            %v1998 = vmul.f32 %v1934, 0.00390625
            %v1999 = vmul.f32 %v1935, 0.00390625
            %v2000 = vmul.f32 %v1936, 0.00390625
            %v2001 = vmul.f32 %v1937, 0.00390625
            %v2002 = vmul.f32 %v1938, 0.00390625
            %v2003 = vmul.f32 %v1939, 0.00390625
            %v2004 = vmul.f32 %v1940, 0.00390625
            %v2005 = vmul.f32 %v1941, 0.00390625
            %2007 = vset.pattern.permute.xlu0 0
            %2008 = vperm.xlu0 %2007, %v1942
            %v2009 = vpop.permute.xlu0 %2008
            %2012 = vset.pattern.permute.xlu0 0
            %2013 = vperm.xlu0 %2012, %v1943
            %v2014 = vpop.permute.xlu0 %2013
            %2017 = vset.pattern.permute.xlu0 0
            %2018 = vperm.xlu0 %2017, %v1944
            %v2019 = vpop.permute.xlu0 %2018
            %2022 = vset.pattern.permute.xlu0 0
            %2023 = vperm.xlu0 %2022, %v1945
            %v2024 = vpop.permute.xlu0 %2023
            %2027 = vset.pattern.permute.xlu0 0
            %2028 = vperm.xlu0 %2027, %v1946
            %v2029 = vpop.permute.xlu0 %2028
            %2032 = vset.pattern.permute.xlu0 0
            %2033 = vperm.xlu0 %2032, %v1947
            %v2034 = vpop.permute.xlu0 %2033
            %2037 = vset.pattern.permute.xlu0 0
            %2038 = vperm.xlu0 %2037, %v1948
            %v2039 = vpop.permute.xlu0 %2038
            %2042 = vset.pattern.permute.xlu0 0
            %2043 = vperm.xlu0 %2042, %v1949
            %v2044 = vpop.permute.xlu0 %2043
            %2047 = vset.pattern.permute.xlu0 0
            %2048 = vperm.xlu0 %2047, %v1950
            %v2049 = vpop.permute.xlu0 %2048
            %2052 = vset.pattern.permute.xlu0 0
            %2053 = vperm.xlu0 %2052, %v1951
            %v2054 = vpop.permute.xlu0 %2053
            %2057 = vset.pattern.permute.xlu0 0
            %2058 = vperm.xlu0 %2057, %v1952
            %v2059 = vpop.permute.xlu0 %2058
            %2062 = vset.pattern.permute.xlu0 0
            %2063 = vperm.xlu0 %2062, %v1953
            %v2064 = vpop.permute.xlu0 %2063
            %2067 = vset.pattern.permute.xlu0 0
            %2068 = vperm.xlu0 %2067, %v1954
            %v2069 = vpop.permute.xlu0 %2068
            %2072 = vset.pattern.permute.xlu0 0
            %2073 = vperm.xlu0 %2072, %v1955
            %v2074 = vpop.permute.xlu0 %2073
            %2077 = vset.pattern.permute.xlu0 0
            %2078 = vperm.xlu0 %2077, %v1956
            %v2079 = vpop.permute.xlu0 %2078
            %2082 = vset.pattern.permute.xlu0 0
            %2083 = vperm.xlu0 %2082, %v1957
            %v2084 = vpop.permute.xlu0 %2083
            %2087 = vset.pattern.permute.xlu0 0
            %2088 = vperm.xlu0 %2087, %v1958
            %v2089 = vpop.permute.xlu0 %2088
            %2092 = vset.pattern.permute.xlu0 0
            %2093 = vperm.xlu0 %2092, %v1959
            %v2094 = vpop.permute.xlu0 %2093
            %2097 = vset.pattern.permute.xlu0 0
            %2098 = vperm.xlu0 %2097, %v1960
            %v2099 = vpop.permute.xlu0 %2098
            %2102 = vset.pattern.permute.xlu0 0
            %2103 = vperm.xlu0 %2102, %v1961
            %v2104 = vpop.permute.xlu0 %2103
            %2107 = vset.pattern.permute.xlu0 0
            %2108 = vperm.xlu0 %2107, %v1962
            %v2109 = vpop.permute.xlu0 %2108
            %2112 = vset.pattern.permute.xlu0 0
            %2113 = vperm.xlu0 %2112, %v1963
            %v2114 = vpop.permute.xlu0 %2113
            %2117 = vset.pattern.permute.xlu0 0
            %2118 = vperm.xlu0 %2117, %v1964
            %v2119 = vpop.permute.xlu0 %2118
            %2122 = vset.pattern.permute.xlu0 0
            %2123 = vperm.xlu0 %2122, %v1965
            %v2124 = vpop.permute.xlu0 %2123
            %2127 = vset.pattern.permute.xlu0 0
            %2128 = vperm.xlu0 %2127, %v1966
            %v2129 = vpop.permute.xlu0 %2128
            %2132 = vset.pattern.permute.xlu0 0
            %2133 = vperm.xlu0 %2132, %v1967
            %v2134 = vpop.permute.xlu0 %2133
            %2137 = vset.pattern.permute.xlu0 0
            %2138 = vperm.xlu0 %2137, %v1968
            %v2139 = vpop.permute.xlu0 %2138
            %2142 = vset.pattern.permute.xlu0 0
            %2143 = vperm.xlu0 %2142, %v1969
            %v2144 = vpop.permute.xlu0 %2143
            %2147 = vset.pattern.permute.xlu0 0
            %2148 = vperm.xlu0 %2147, %v1970
            %v2149 = vpop.permute.xlu0 %2148
            %2152 = vset.pattern.permute.xlu0 0
            %2153 = vperm.xlu0 %2152, %v1971
            %v2154 = vpop.permute.xlu0 %2153
            %2157 = vset.pattern.permute.xlu0 0
            %2158 = vperm.xlu0 %2157, %v1972
            %v2159 = vpop.permute.xlu0 %2158
            %2162 = vset.pattern.permute.xlu0 0
            %2163 = vperm.xlu0 %2162, %v1973
            %v2164 = vpop.permute.xlu0 %2163
            %2167 = vset.pattern.permute.xlu0 0
            %2168 = vperm.xlu0 %2167, %v1974
            %v2169 = vpop.permute.xlu0 %2168
            %2172 = vset.pattern.permute.xlu0 0
            %2173 = vperm.xlu0 %2172, %v1975
            %v2174 = vpop.permute.xlu0 %2173
            %2177 = vset.pattern.permute.xlu0 0
            %2178 = vperm.xlu0 %2177, %v1976
            %v2179 = vpop.permute.xlu0 %2178
            %2182 = vset.pattern.permute.xlu0 0
            %2183 = vperm.xlu0 %2182, %v1977
            %v2184 = vpop.permute.xlu0 %2183
            %2187 = vset.pattern.permute.xlu0 0
            %2188 = vperm.xlu0 %2187, %v1978
            %v2189 = vpop.permute.xlu0 %2188
            %2192 = vset.pattern.permute.xlu0 0
            %2193 = vperm.xlu0 %2192, %v1979
            %v2194 = vpop.permute.xlu0 %2193
            %2197 = vset.pattern.permute.xlu0 0
            %2198 = vperm.xlu0 %2197, %v1980
            %v2199 = vpop.permute.xlu0 %2198
            %2202 = vset.pattern.permute.xlu0 0
            %2203 = vperm.xlu0 %2202, %v1981
            %v2204 = vpop.permute.xlu0 %2203
            %2207 = vset.pattern.permute.xlu0 0
            %2208 = vperm.xlu0 %2207, %v1982
            %v2209 = vpop.permute.xlu0 %2208
            %2212 = vset.pattern.permute.xlu0 0
            %2213 = vperm.xlu0 %2212, %v1983
            %v2214 = vpop.permute.xlu0 %2213
            %2217 = vset.pattern.permute.xlu0 0
            %2218 = vperm.xlu0 %2217, %v1984
            %v2219 = vpop.permute.xlu0 %2218
            %2222 = vset.pattern.permute.xlu0 0
            %2223 = vperm.xlu0 %2222, %v1985
            %v2224 = vpop.permute.xlu0 %2223
            %2227 = vset.pattern.permute.xlu0 0
            %2228 = vperm.xlu0 %2227, %v1986
            %v2229 = vpop.permute.xlu0 %2228
            %2232 = vset.pattern.permute.xlu0 0
            %2233 = vperm.xlu0 %2232, %v1987
            %v2234 = vpop.permute.xlu0 %2233
            %2237 = vset.pattern.permute.xlu0 0
            %2238 = vperm.xlu0 %2237, %v1988
            %v2239 = vpop.permute.xlu0 %2238
            %2242 = vset.pattern.permute.xlu0 0
            %2243 = vperm.xlu0 %2242, %v1989
            %v2244 = vpop.permute.xlu0 %2243
            %2247 = vset.pattern.permute.xlu0 0
            %2248 = vperm.xlu0 %2247, %v1990
            %v2249 = vpop.permute.xlu0 %2248
            %2252 = vset.pattern.permute.xlu0 0
            %2253 = vperm.xlu0 %2252, %v1991
            %v2254 = vpop.permute.xlu0 %2253
            %2257 = vset.pattern.permute.xlu0 0
            %2258 = vperm.xlu0 %2257, %v1992
            %v2259 = vpop.permute.xlu0 %2258
            %2262 = vset.pattern.permute.xlu0 0
            %2263 = vperm.xlu0 %2262, %v1993
            %v2264 = vpop.permute.xlu0 %2263
            %2267 = vset.pattern.permute.xlu0 0
            %2268 = vperm.xlu0 %2267, %v1994
            %v2269 = vpop.permute.xlu0 %2268
            %2272 = vset.pattern.permute.xlu0 0
            %2273 = vperm.xlu0 %2272, %v1995
            %v2274 = vpop.permute.xlu0 %2273
            %2277 = vset.pattern.permute.xlu0 0
            %2278 = vperm.xlu0 %2277, %v1996
            %v2279 = vpop.permute.xlu0 %2278
            %2282 = vset.pattern.permute.xlu0 0
            %2283 = vperm.xlu0 %2282, %v1997
            %v2284 = vpop.permute.xlu0 %2283
            %2287 = vset.pattern.permute.xlu0 0
            %2288 = vperm.xlu0 %2287, %v1998
            %v2289 = vpop.permute.xlu0 %2288
            %2292 = vset.pattern.permute.xlu0 0
            %2293 = vperm.xlu0 %2292, %v1999
            %v2294 = vpop.permute.xlu0 %2293
            %2297 = vset.pattern.permute.xlu0 0
            %2298 = vperm.xlu0 %2297, %v2000
            %v2299 = vpop.permute.xlu0 %2298
            %2302 = vset.pattern.permute.xlu0 0
            %2303 = vperm.xlu0 %2302, %v2001
            %v2304 = vpop.permute.xlu0 %2303
            %2307 = vset.pattern.permute.xlu0 0
            %2308 = vperm.xlu0 %2307, %v2002
            %v2309 = vpop.permute.xlu0 %2308
            %2312 = vset.pattern.permute.xlu0 0
            %2313 = vperm.xlu0 %2312, %v2003
            %v2314 = vpop.permute.xlu0 %2313
            %2317 = vset.pattern.permute.xlu0 0
            %2318 = vperm.xlu0 %2317, %v2004
            %v2319 = vpop.permute.xlu0 %2318
            %2322 = vset.pattern.permute.xlu0 0
            %2323 = vperm.xlu0 %2322, %v2005
            %v2324 = vpop.permute.xlu0 %2323
            %v2326 = vmul.f32 %v2009, %v1805
            %v2327 = vmul.f32 %v2014, %v1806
            %v2328 = vmul.f32 %v2019, %v1807
            %v2329 = vmul.f32 %v2024, %v1808
            %v2330 = vmul.f32 %v2029, %v1809
            %v2331 = vmul.f32 %v2034, %v1810
            %v2332 = vmul.f32 %v2039, %v1811
            %v2333 = vmul.f32 %v2044, %v1812
            %v2334 = vmul.f32 %v2049, %v1813
            %v2335 = vmul.f32 %v2054, %v1814
            %v2336 = vmul.f32 %v2059, %v1815
            %v2337 = vmul.f32 %v2064, %v1816
            %v2338 = vmul.f32 %v2069, %v1817
            %v2339 = vmul.f32 %v2074, %v1818
            %v2340 = vmul.f32 %v2079, %v1819
            %v2341 = vmul.f32 %v2084, %v1820
            %v2342 = vmul.f32 %v2089, %v1821
            %v2343 = vmul.f32 %v2094, %v1822
            %v2344 = vmul.f32 %v2099, %v1823
            %v2345 = vmul.f32 %v2104, %v1824
            %v2346 = vmul.f32 %v2109, %v1825
            %v2347 = vmul.f32 %v2114, %v1826
            %v2348 = vmul.f32 %v2119, %v1827
            %v2349 = vmul.f32 %v2124, %v1828
            %v2350 = vmul.f32 %v2129, %v1829
            %v2351 = vmul.f32 %v2134, %v1830
            %v2352 = vmul.f32 %v2139, %v1831
            %v2353 = vmul.f32 %v2144, %v1832
            %v2354 = vmul.f32 %v2149, %v1833
            %v2355 = vmul.f32 %v2154, %v1834
            %v2356 = vmul.f32 %v2159, %v1835
            %v2357 = vmul.f32 %v2164, %v1836
            %v2358 = vmul.f32 %v2169, %v1837
            %v2359 = vmul.f32 %v2174, %v1838
            %v2360 = vmul.f32 %v2179, %v1839
            %v2361 = vmul.f32 %v2184, %v1840
            %v2362 = vmul.f32 %v2189, %v1841
            %v2363 = vmul.f32 %v2194, %v1842
            %v2364 = vmul.f32 %v2199, %v1843
            %v2365 = vmul.f32 %v2204, %v1844
            %v2366 = vmul.f32 %v2209, %v1845
            %v2367 = vmul.f32 %v2214, %v1846
            %v2368 = vmul.f32 %v2219, %v1847
            %v2369 = vmul.f32 %v2224, %v1848
            %v2370 = vmul.f32 %v2229, %v1849
            %v2371 = vmul.f32 %v2234, %v1850
            %v2372 = vmul.f32 %v2239, %v1851
            %v2373 = vmul.f32 %v2244, %v1852
            %v2374 = vmul.f32 %v2249, %v1853
            %v2375 = vmul.f32 %v2254, %v1854
            %v2376 = vmul.f32 %v2259, %v1855
            %v2377 = vmul.f32 %v2264, %v1856
            %v2378 = vmul.f32 %v2269, %v1857
            %v2379 = vmul.f32 %v2274, %v1858
            %v2380 = vmul.f32 %v2279, %v1859
            %v2381 = vmul.f32 %v2284, %v1860
            %v2382 = vmul.f32 %v2289, %v1861
            %v2383 = vmul.f32 %v2294, %v1862
            %v2384 = vmul.f32 %v2299, %v1863
            %v2385 = vmul.f32 %v2304, %v1864
            %v2386 = vmul.f32 %v2309, %v1865
            %v2387 = vmul.f32 %v2314, %v1866
            %v2388 = vmul.f32 %v2319, %v1867
            %v2389 = vmul.f32 %v2324, %v1868
            %v2390 = vadd.f32 %v2326, %v2327
            %v2391 = vadd.f32 %v2390, %v2328
            %v2392 = vadd.f32 %v2391, %v2329
            %v2393 = vadd.f32 %v2392, %v2330
            %v2394 = vadd.f32 %v2393, %v2331
            %v2395 = vadd.f32 %v2394, %v2332
            %v2396 = vadd.f32 %v2395, %v2333
            %v2397 = vadd.f32 %v2396, %v2334
            %v2398 = vadd.f32 %v2397, %v2335
            %v2399 = vadd.f32 %v2398, %v2336
            %v2400 = vadd.f32 %v2399, %v2337
            %v2401 = vadd.f32 %v2400, %v2338
            %v2402 = vadd.f32 %v2401, %v2339
            %v2403 = vadd.f32 %v2402, %v2340
            %v2404 = vadd.f32 %v2403, %v2341
            %v2405 = vadd.f32 %v2404, %v2342
            %v2406 = vadd.f32 %v2405, %v2343
            %v2407 = vadd.f32 %v2406, %v2344
            %v2408 = vadd.f32 %v2407, %v2345
            %v2409 = vadd.f32 %v2408, %v2346
            %v2410 = vadd.f32 %v2409, %v2347
            %v2411 = vadd.f32 %v2410, %v2348
            %v2412 = vadd.f32 %v2411, %v2349
            %v2413 = vadd.f32 %v2412, %v2350
            %v2414 = vadd.f32 %v2413, %v2351
            %v2415 = vadd.f32 %v2414, %v2352
            %v2416 = vadd.f32 %v2415, %v2353
            %v2417 = vadd.f32 %v2416, %v2354
            %v2418 = vadd.f32 %v2417, %v2355
            %v2419 = vadd.f32 %v2418, %v2356
            %v2420 = vadd.f32 %v2419, %v2357
            %v2421 = vadd.f32 %v2420, %v2358
            %v2422 = vadd.f32 %v2421, %v2359
            %v2423 = vadd.f32 %v2422, %v2360
            %v2424 = vadd.f32 %v2423, %v2361
            %v2425 = vadd.f32 %v2424, %v2362
            %v2426 = vadd.f32 %v2425, %v2363
            %v2427 = vadd.f32 %v2426, %v2364
            %v2428 = vadd.f32 %v2427, %v2365
            %v2429 = vadd.f32 %v2428, %v2366
            %v2430 = vadd.f32 %v2429, %v2367
            %v2431 = vadd.f32 %v2430, %v2368
            %v2432 = vadd.f32 %v2431, %v2369
            %v2433 = vadd.f32 %v2432, %v2370
            %v2434 = vadd.f32 %v2433, %v2371
            %v2435 = vadd.f32 %v2434, %v2372
            %v2436 = vadd.f32 %v2435, %v2373
            %v2437 = vadd.f32 %v2436, %v2374
            %v2438 = vadd.f32 %v2437, %v2375
            %v2439 = vadd.f32 %v2438, %v2376
            %v2440 = vadd.f32 %v2439, %v2377
            %v2441 = vadd.f32 %v2440, %v2378
            %v2442 = vadd.f32 %v2441, %v2379
            %v2443 = vadd.f32 %v2442, %v2380
            %v2444 = vadd.f32 %v2443, %v2381
            %v2445 = vadd.f32 %v2444, %v2382
            %v2446 = vadd.f32 %v2445, %v2383
            %v2447 = vadd.f32 %v2446, %v2384
            %v2448 = vadd.f32 %v2447, %v2385
            %v2449 = vadd.f32 %v2448, %v2386
            %v2450 = vadd.f32 %v2449, %v2387
            %v2451 = vadd.f32 %v2450, %v2388
            %v2452 = vadd.f32 %v2451, %v2389
            %v2453 = vrot.slane %v2452, 4
            %v2454 = vadd.f32 %v2452, %v2453
            %v2455 = vrot.slane %v2454, 2
            %v2456 = vadd.f32 %v2454, %v2455
            %v2457 = vrot.slane %v2456, 1
            %v2458 = vadd.f32 %v2456, %v2457
            %v2459 = vadd.f32 %v2458, %v1869
            %v2460 = vsub.f32 0.0, %v2459
            %v2461 = vmul.f32 %v2460, 1.442695
            %v2462 = vpow.pop %v2461
            %v2463 = vadd.f32 %v2462, 1.0
            %v2464 = vrcp.pop %v2463
            %s2465 = scalar_lea.vmem [#allocation4], %s1871
            %2466 = vst [vmem:[%s2465] sm:$0x1] %v2464
          $region94: #{tpu_custom_call.1} parent=88 // loop_footer
            %s1875 = sadd.s32 1, %s1871
          $region95: #{tpu_custom_call.1} parent=88 // loop_footer_branch
            %1870 = sbr.rel target = $region91
          $region96: #{tpu_custom_call.1} parent=88 // loop_exit
            _
        $region89: #{tpu_custom_call.1} parent=69 // pred_fallthru
          _
        // Predicated region
        $region97: #{tpu_custom_call.1} parent=69 // pred_check
          %p2467 = pneg %p159
        $region98: #{tpu_custom_call.1} parent=69 // pred_check_branch
          %2469 = sbr.rel (%p2467) target = $region100
        $region99: #{tpu_custom_call.1} parent=69 // pred_region
          %s2471 = ssub.s32 32, 32
          %2472 = vsyncadd [#allocation5], %s2471
          %s2473 = smul.addr %s21, 32
          %s2474 = scalar_lea.hbm %s5, %s2473
          %s2476 = sshll.u32 [#allocation4], 4
          %s2477 = int_to_ptr.vmem [resolvable:$true] %s2476
          %2479 = dma.vmem_to_hbm [thread:$0]  %s2477, 32, %s2474, [#allocation5]
        $region100: #{tpu_custom_call.1} parent=69 // pred_fallthru
          _
        // Predicated region
        $region101: #{tpu_custom_call.1} parent=69 // pred_check
          %p2480 = pneg %p159
        $region102: #{tpu_custom_call.1} parent=69 // pred_check_branch
          %2482 = sbr.rel (%p2480) target = $region104
        $region103: #{tpu_custom_call.1} parent=69 // pred_region
          %2483 = dma.done [#allocation5], 32
        $region104: #{tpu_custom_call.1} parent=69 // pred_fallthru
          _
      $region70: #{tpu_custom_call.1} parent=5 // pred_fallthru
        _
      %p2484 = scmp.le.s32.totalorder 2, %s12
      // Predicated region
      $region105: #{tpu_custom_call.1} parent=5 // pred_check
        %p2485 = pneg %p2484
      $region106: #{tpu_custom_call.1} parent=5 // pred_check_branch
        %2487 = sbr.rel (%p2485) target = $region108
      $region107: #{tpu_custom_call.1} parent=5 // pred_region
        %s2488 = ssub.s32 %s12, 2
      $region108: #{tpu_custom_call.1} parent=5 // pred_fallthru
        _
    $region6: #{tpu_custom_call.1} parent=1 // loop_footer
      %s16 = sadd.s32 1, %s12
    $region7: #{tpu_custom_call.1} parent=1 // loop_footer_branch
      %11 = sbr.rel target = $region3
    $region8: #{tpu_custom_call.1} parent=1 // loop_exit
      _
    %2489 = vsyncpa [#allocation5], 1
    %s2490 = scalar_lea.sflag [#allocation5], 1
    %2491 = vsyncpa %s2490, 1

</llo_original>
